<compile_context>
chip_gen: v7x
topology: tpu7x:2x2x1
jax: 0.10.0
libtpu: 0.0.40
codegen_flags: <defaults>
</compile_context>

<pallas_src>
import jax
import jax.numpy as jnp
from jax.experimental import pallas as pl
from jax.experimental.pallas import tpu as pltpu

GROUPS = 32
EPS = 1e-6


# ------------------------------- the kernel --------------------------------

def attn_block_kernel(x_ref, gnw_ref, gnb_ref, oh_ref, wqkv_ref, bqkv_ref,
                      wp_ref, bp_ref, o_ref):
    x_cn = x_ref[0]                                 # (C, N) f32, channel-major as stored
    C, N = x_cn.shape
    x = jnp.transpose(x_cn)                         # (N, C) f32 — channels on lanes
    inv_count = 1.0 / float(N * (C // GROUPS))

    # ---- GroupNorm: single fused stats pass; group reduce/expand via one-hot matmuls ----
    # (E[x^2]-E[x]^2 in f32; fine for centered activations — two-pass variance otherwise.)
    s1 = jnp.sum(x, axis=0, keepdims=True)          # (1, C)
    s2 = jnp.sum(x * x, axis=0, keepdims=True)      # (1, C)
    oh = oh_ref[...]                                # (C, G) 0/1 f32
    g1 = jnp.dot(s1, oh, preferred_element_type=jnp.float32)     # (1, G)
    g2 = jnp.dot(s2, oh, preferred_element_type=jnp.float32)     # (1, G)
    mean_g = g1 * inv_count
    var_g = g2 * inv_count - mean_g * mean_g
    inv_g = jax.lax.rsqrt(var_g + EPS)
    # expand group -> channel: (1,G) · (C,G)ᵀ  (rhs-transposed matmul, stays lane-dense)
    mean_c = jax.lax.dot_general(mean_g, oh, (((1,), (1,)), ((), ())),
                                 preferred_element_type=jnp.float32)  # (1, C)
    inv_c = jax.lax.dot_general(inv_g, oh, (((1,), (1,)), ((), ())),
                                preferred_element_type=jnp.float32)   # (1, C)
    scale = inv_c * gnw_ref[...]                    # fold affine into scale/shift
    shift = gnb_ref[...] - mean_c * scale
    xn = (x * scale + shift).astype(jnp.bfloat16)   # (N, C) bf16

    # ---- fused q/k/v projection: one (N,C)@(C,3C) MXU matmul; single bf16 qkv buffer ----
    # (1/sqrt(C) already folded into the q weights/bias by the wrapper.)
    qkv = (jnp.dot(xn, wqkv_ref[...], preferred_element_type=jnp.float32)
           + bqkv_ref[...]).astype(jnp.bfloat16)    # (N, 3C) bf16
    q = qkv[:, :C]
    k = qkv[:, C:2 * C]
    v = qkv[:, 2 * C:]

    # ---- attention scores (q already pre-scaled) ----
    scores = jax.lax.dot_general(q, k, (((1,), (1,)), ((), ())),
                                 preferred_element_type=jnp.float32)  # (N, N) f32

    # ---- softmax over keys: bf16 exp, f32 denominator via MXU, deferred normalization ----
    m = jnp.max(scores, axis=-1, keepdims=True)
    p = jnp.exp((scores - m).astype(jnp.bfloat16))                    # (N, N) bf16, in (0,1]
    l = jnp.dot(p, jnp.ones((N, 1), jnp.bfloat16),
                preferred_element_type=jnp.float32)                   # (N, 1) f32 row sums

    # ---- (unnormalized p) @ v, then scale rows by 1/l, then output projection ----
    h = jnp.dot(p, v, preferred_element_type=jnp.float32)             # (N, C) f32
    h = h * pl.reciprocal(l, approx=True)                             # deferred softmax 1/l
    h = jnp.dot(h.astype(jnp.bfloat16), wp_ref[...],
                preferred_element_type=jnp.float32) + bp_ref[...]     # (N, C) f32

    # ---- residual add in the stored (C, N) layout; lane-dense (N multiple of 128) store ----
    o_ref[0] = (x_ref[0] + jnp.transpose(h)).astype(o_ref.dtype)


# -------------------------------- wrapper ----------------------------------

def attn_block(x_nchw, params):
    """x_nchw: (B, C, H, W) like PyTorch. params hold PyTorch-style tensors:
       norm_{w,b}: (C,), {q,k,v,proj}_w: (C, C, 1, 1), {q,k,v,proj}_b: (C,)."""
    B, C, H, W = x_nchw.shape
    N = H * W
    assert C % GROUPS == 0
    # Pure reshape (no transpose => no HBM relayout traffic outside the kernel).
    x = x_nchw.reshape(B, C, N).astype(jnp.float32)

    # 1x1 conv weight (Cout, Cin, 1, 1) -> (Cin, Cout) matmul weight.
    def w2mat(w):
        return jnp.transpose(w.reshape(w.shape[0], w.shape[1]), (1, 0))

    qscale = C ** -0.5  # fold the attention score scale into q's weights/bias
    wqkv = jnp.concatenate(
        [w2mat(params["q_w"]) * qscale, w2mat(params["k_w"]), w2mat(params["v_w"])],
        axis=1).astype(jnp.bfloat16)                                   # (C, 3C) bf16
    bqkv = jnp.concatenate(
        [params["q_b"] * qscale, params["k_b"], params["v_b"]]
    ).astype(jnp.float32).reshape(1, 3 * C)
    wp = w2mat(params["proj_w"]).astype(jnp.bfloat16)                  # (C, C) bf16
    bp = params["proj_b"].astype(jnp.float32).reshape(1, C)
    gnw = params["norm_w"].astype(jnp.float32).reshape(1, C)
    gnb = params["norm_b"].astype(jnp.float32).reshape(1, C)
    cs = C // GROUPS
    onehot = (jnp.arange(C)[:, None] // cs ==
              jnp.arange(GROUPS)[None, :]).astype(jnp.float32)          # (C, G)

    def const_spec(a):                   # grid-invariant parameter block
        r = a.ndim
        return pl.BlockSpec(a.shape, lambda b, _r=r: (0,) * _r)

    out = pl.pallas_call(
        attn_block_kernel,
        out_shape=jax.ShapeDtypeStruct((B, C, N), jnp.float32),
        grid=(B,),
        in_specs=[pl.BlockSpec((1, C, N), lambda b: (b, 0, 0)),
                  const_spec(gnw), const_spec(gnb), const_spec(onehot),
                  const_spec(wqkv), const_spec(bqkv),
                  const_spec(wp), const_spec(bp)],
        out_specs=pl.BlockSpec((1, C, N), lambda b: (b, 0, 0)),
        compiler_params=pltpu.CompilerParams(
            dimension_semantics=("parallel",)),
        # TODO(synk): set vmem_limit_bytes explicitly once N or C grow (16/32 MiB default
        # scoped VMEM; v7x physical ceiling is 64 MiB).
    )(x, gnw, gnb, onehot, wqkv, bqkv, wp, bp)

    return out.reshape(B, C, H, W)       # pure reshape back to NCHW


# -------------------------- pure-JAX reference ------------------------------

def attn_block_reference(x_nchw, params):
    x = x_nchw.astype(jnp.float32)
    B, C, H, W = x.shape

    xg = x.reshape(B, GROUPS, C // GROUPS, H, W)
    mean = jnp.mean(xg, axis=(2, 3, 4), keepdims=True)
    var = jnp.mean((xg - mean) ** 2, axis=(2, 3, 4), keepdims=True)
    xn = ((xg - mean) / jnp.sqrt(var + EPS)).reshape(B, C, H, W)
    xn = xn * params["norm_w"][None, :, None, None] + params["norm_b"][None, :, None, None]

    def conv1x1(z, w, b):
        wm = w.reshape(w.shape[0], w.shape[1])          # (Cout, Cin)
        return jnp.einsum("oc,bchw->bohw", wm, z) + b[None, :, None, None]

    q = conv1x1(xn, params["q_w"], params["q_b"]).reshape(B, C, H * W)
    k = conv1x1(xn, params["k_w"], params["k_b"]).reshape(B, C, H * W)
    v = conv1x1(xn, params["v_w"], params["v_b"]).reshape(B, C, H * W)
    q = jnp.transpose(q, (0, 2, 1))                     # (B, N, C)
    attn = jnp.einsum("bnc,bcm->bnm", q, k) * (C ** -0.5)
    attn = jax.nn.softmax(attn, axis=2)
    h = jnp.einsum("bcm,bnm->bcn", v, attn)             # == torch.bmm(v, attn.permute(0,2,1))
    h = conv1x1(h.reshape(B, C, H, W), params["proj_w"], params["proj_b"])
    return x + h


# ---------------------------------- main ------------------------------------

if __name__ == "__main__":
    # GroupNorm(32) requires C % 32 == 0; C=128 keeps the lane axis fully dense.
    B, C, H, W = 2, 128, 16, 16

    key = jax.random.PRNGKey(0)
    ks = jax.random.split(key, 11)
    s = 0.05
    params = {
        "norm_w": 1.0 + 0.1 * jax.random.normal(ks[0], (C,), jnp.float32),
        "norm_b": 0.1 * jax.random.normal(ks[1], (C,), jnp.float32),
        "q_w": s * jax.random.normal(ks[2], (C, C, 1, 1), jnp.float32),
        "q_b": s * jax.random.normal(ks[3], (C,), jnp.float32),
        "k_w": s * jax.random.normal(ks[4], (C, C, 1, 1), jnp.float32),
        "k_b": s * jax.random.normal(ks[5], (C,), jnp.float32),
        "v_w": s * jax.random.normal(ks[6], (C, C, 1, 1), jnp.float32),
        "v_b": s * jax.random.normal(ks[7], (C,), jnp.float32),
        "proj_w": s * jax.random.normal(ks[8], (C, C, 1, 1), jnp.float32),
        "proj_b": s * jax.random.normal(ks[9], (C,), jnp.float32),
    }
    x = jax.random.normal(ks[10], (B, C, H, W), jnp.float32)   # NCHW like PyTorch

    out = jax.block_until_ready(attn_block(x, params))
    ref = jax.block_until_ready(attn_block_reference(x, params))

    assert out.shape == (B, C, H, W), out.shape
    max_err = float(jnp.max(jnp.abs(out - ref)))
    assert jnp.allclose(out, ref, rtol=2e-2, atol=2e-2), max_err  # bf16 matmuls/exp vs f32 ref
    print("KERNEL_OK")
</pallas_src>

<mosaic_0001>
module attributes {stable_mosaic.version = 11 : i64} {
  func.func @attn_block_kernel(%arg0: i32, %arg1: memref<1x128x256xf32, #tpu.memory_space<vmem>>, %arg2: memref<1x128xf32, #tpu.memory_space<vmem>>, %arg3: memref<1x128xf32, #tpu.memory_space<vmem>>, %arg4: memref<128x32xf32, #tpu.memory_space<vmem>>, %arg5: memref<128x384xbf16, #tpu.memory_space<vmem>>, %arg6: memref<1x384xf32, #tpu.memory_space<vmem>>, %arg7: memref<128x128xbf16, #tpu.memory_space<vmem>>, %arg8: memref<1x128xf32, #tpu.memory_space<vmem>>, %arg9: memref<1x128x256xf32, #tpu.memory_space<vmem>>) attributes {dimension_semantics = [#tpu.dimension_semantics<parallel>], iteration_bounds = array<i64: 2>, scalar_prefetch = 0 : i64, scratch_operands = 0 : i64, tpu.core_type = #tpu.core_type<tc>, window_params = [{transform_indices = @transform_0, window_bounds = array<i64: 1, 128, 256>}, {pipeline_mode = #tpu.pipeline_mode<synchronous>, transform_indices = @transform_1, window_bounds = array<i64: 1, 128>}, {pipeline_mode = #tpu.pipeline_mode<synchronous>, transform_indices = @transform_2, window_bounds = array<i64: 1, 128>}, {pipeline_mode = #tpu.pipeline_mode<synchronous>, transform_indices = @transform_3, window_bounds = array<i64: 128, 32>}, {pipeline_mode = #tpu.pipeline_mode<synchronous>, transform_indices = @transform_4, window_bounds = array<i64: 128, 384>}, {pipeline_mode = #tpu.pipeline_mode<synchronous>, transform_indices = @transform_5, window_bounds = array<i64: 1, 384>}, {pipeline_mode = #tpu.pipeline_mode<synchronous>, transform_indices = @transform_6, window_bounds = array<i64: 128, 128>}, {pipeline_mode = #tpu.pipeline_mode<synchronous>, transform_indices = @transform_7, window_bounds = array<i64: 1, 128>}, {transform_indices = @transform_8, window_bounds = array<i64: 1, 128, 256>}]} {
    %c0 = arith.constant 0 : index
    %c0_0 = arith.constant 0 : index
    %c0_1 = arith.constant 0 : index
    %0 = vector.load %arg1[%c0, %c0_0, %c0_1] : memref<1x128x256xf32, #tpu.memory_space<vmem>>, vector<1x128x256xf32>
    %1 = vector.shape_cast %0 : vector<1x128x256xf32> to vector<128x256xf32>
    %2 = tpu.transpose %1, [1, 0] : vector<128x256xf32> -> vector<256x128xf32>
    %cst = arith.constant dense<0.000000e+00> : vector<128xf32>
    %3 = vector.multi_reduction <add>, %2, %cst [0] : vector<256x128xf32> to vector<128xf32>
    %4 = vector.shape_cast %3 : vector<128xf32> to vector<1x128xf32>
    %5 = arith.mulf %2, %2 : vector<256x128xf32>
    %cst_2 = arith.constant dense<0.000000e+00> : vector<128xf32>
    %6 = vector.multi_reduction <add>, %5, %cst_2 [0] : vector<256x128xf32> to vector<128xf32>
    %7 = vector.shape_cast %6 : vector<128xf32> to vector<1x128xf32>
    %c0_3 = arith.constant 0 : index
    %c0_4 = arith.constant 0 : index
    %8 = vector.load %arg4[%c0_3, %c0_4] : memref<128x32xf32, #tpu.memory_space<vmem>>, vector<128x32xf32>
    %cst_5 = arith.constant dense<0.000000e+00> : vector<1x32xf32>
    %9 = tpu.matmul %4, %8, %cst_5 {dimension_numbers = #tpu.dot_dimension_numbers<[1], [0], [0], [1], [0, 0, 1, 1], [], []>} : vector<1x128xf32>, vector<128x32xf32>, vector<1x32xf32> -> vector<1x32xf32>
    %cst_6 = arith.constant dense<0.000000e+00> : vector<1x32xf32>
    %10 = tpu.matmul %7, %8, %cst_6 {dimension_numbers = #tpu.dot_dimension_numbers<[1], [0], [0], [1], [0, 0, 1, 1], [], []>} : vector<1x128xf32>, vector<128x32xf32>, vector<1x32xf32> -> vector<1x32xf32>
    %cst_7 = arith.constant 9.765625E-4 : f32
    %11 = vector.broadcast %cst_7 : f32 to vector<1x32xf32>
    %12 = arith.mulf %9, %11 : vector<1x32xf32>
    %cst_8 = arith.constant 9.765625E-4 : f32
    %13 = vector.broadcast %cst_8 : f32 to vector<1x32xf32>
    %14 = arith.mulf %10, %13 : vector<1x32xf32>
    %15 = arith.mulf %12, %12 : vector<1x32xf32>
    %16 = arith.subf %14, %15 : vector<1x32xf32>
    %cst_9 = arith.constant 9.99999997E-7 : f32
    %17 = vector.broadcast %cst_9 : f32 to vector<1x32xf32>
    %18 = arith.addf %16, %17 : vector<1x32xf32>
    %19 = math.rsqrt %18 : vector<1x32xf32>
    %cst_10 = arith.constant dense<0.000000e+00> : vector<1x128xf32>
    %20 = tpu.matmul %12, %8, %cst_10 {dimension_numbers = #tpu.dot_dimension_numbers<[1], [1], [0], [0], [0, 0, 1, 0], [], []>} : vector<1x32xf32>, vector<128x32xf32>, vector<1x128xf32> -> vector<1x128xf32>
    %cst_11 = arith.constant dense<0.000000e+00> : vector<1x128xf32>
    %21 = tpu.matmul %19, %8, %cst_11 {dimension_numbers = #tpu.dot_dimension_numbers<[1], [1], [0], [0], [0, 0, 1, 0], [], []>} : vector<1x32xf32>, vector<128x32xf32>, vector<1x128xf32> -> vector<1x128xf32>
    %c0_12 = arith.constant 0 : index
    %c0_13 = arith.constant 0 : index
    %22 = vector.load %arg2[%c0_12, %c0_13] : memref<1x128xf32, #tpu.memory_space<vmem>>, vector<1x128xf32>
    %23 = arith.mulf %21, %22 : vector<1x128xf32>
    %c0_14 = arith.constant 0 : index
    %c0_15 = arith.constant 0 : index
    %24 = vector.load %arg3[%c0_14, %c0_15] : memref<1x128xf32, #tpu.memory_space<vmem>>, vector<1x128xf32>
    %25 = arith.mulf %20, %23 : vector<1x128xf32>
    %26 = arith.subf %24, %25 : vector<1x128xf32>
    %27 = vector.broadcast %23 : vector<1x128xf32> to vector<256x128xf32>
    %28 = arith.mulf %2, %27 : vector<256x128xf32>
    %29 = vector.broadcast %26 : vector<1x128xf32> to vector<256x128xf32>
    %30 = arith.addf %28, %29 : vector<256x128xf32>
    %31 = arith.truncf %30 : vector<256x128xf32> to vector<256x128xbf16>
    %c0_16 = arith.constant 0 : index
    %c0_17 = arith.constant 0 : index
    %32 = vector.load %arg5[%c0_16, %c0_17] : memref<128x384xbf16, #tpu.memory_space<vmem>>, vector<128x384xbf16>
    %cst_18 = arith.constant dense<0.000000e+00> : vector<256x384xf32>
    %33 = tpu.matmul %31, %32, %cst_18 {dimension_numbers = #tpu.dot_dimension_numbers<[1], [0], [0], [1], [0, 0, 1, 1], [], []>} : vector<256x128xbf16>, vector<128x384xbf16>, vector<256x384xf32> -> vector<256x384xf32>
    %c0_19 = arith.constant 0 : index
    %c0_20 = arith.constant 0 : index
    %34 = vector.load %arg6[%c0_19, %c0_20] : memref<1x384xf32, #tpu.memory_space<vmem>>, vector<1x384xf32>
    %35 = vector.broadcast %34 : vector<1x384xf32> to vector<256x384xf32>
    %36 = arith.addf %33, %35 : vector<256x384xf32>
    %37 = arith.truncf %36 : vector<256x384xf32> to vector<256x384xbf16>
    %38 = vector.extract_strided_slice %37 {offsets = [0, 0], sizes = [256, 128], strides = [1, 1]} : vector<256x384xbf16> to vector<256x128xbf16>
    %39 = vector.extract_strided_slice %37 {offsets = [0, 128], sizes = [256, 128], strides = [1, 1]} : vector<256x384xbf16> to vector<256x128xbf16>
    %40 = vector.extract_strided_slice %37 {offsets = [0, 256], sizes = [256, 128], strides = [1, 1]} : vector<256x384xbf16> to vector<256x128xbf16>
    %cst_21 = arith.constant dense<0.000000e+00> : vector<256x256xf32>
    %41 = tpu.matmul %38, %39, %cst_21 {dimension_numbers = #tpu.dot_dimension_numbers<[1], [1], [0], [0], [0, 0, 1, 0], [], []>} : vector<256x128xbf16>, vector<256x128xbf16>, vector<256x256xf32> -> vector<256x256xf32>
    %cst_22 = arith.constant dense<0xFF800000> : vector<256xf32>
    %42 = vector.multi_reduction <maximumf>, %41, %cst_22 [1] : vector<256x256xf32> to vector<256xf32>
    %43 = vector.shape_cast %42 : vector<256xf32> to vector<256x1xf32>
    %44 = vector.broadcast %43 : vector<256x1xf32> to vector<256x256xf32>
    %45 = arith.subf %41, %44 : vector<256x256xf32>
    %46 = arith.truncf %45 : vector<256x256xf32> to vector<256x256xbf16>
    %47 = math.exp %46 : vector<256x256xbf16>
    %cst_23 = arith.constant 1.000000e+00 : bf16
    %48 = vector.broadcast %cst_23 : bf16 to vector<256x1xbf16>
    %cst_24 = arith.constant dense<0.000000e+00> : vector<256x1xf32>
    %49 = tpu.matmul %47, %48, %cst_24 {dimension_numbers = #tpu.dot_dimension_numbers<[1], [0], [0], [1], [0, 0, 1, 1], [], []>} : vector<256x256xbf16>, vector<256x1xbf16>, vector<256x1xf32> -> vector<256x1xf32>
    %cst_25 = arith.constant dense<0.000000e+00> : vector<256x128xf32>
    %50 = tpu.matmul %47, %40, %cst_25 {dimension_numbers = #tpu.dot_dimension_numbers<[1], [0], [0], [1], [0, 0, 1, 1], [], []>} : vector<256x256xbf16>, vector<256x128xbf16>, vector<256x128xf32> -> vector<256x128xf32>
    %51 = tpu.reciprocal %49 {approx = true} : vector<256x1xf32> -> vector<256x1xf32>
    %52 = vector.broadcast %51 : vector<256x1xf32> to vector<256x128xf32>
    %53 = arith.mulf %50, %52 : vector<256x128xf32>
    %54 = arith.truncf %53 : vector<256x128xf32> to vector<256x128xbf16>
    %c0_26 = arith.constant 0 : index
    %c0_27 = arith.constant 0 : index
    %55 = vector.load %arg7[%c0_26, %c0_27] : memref<128x128xbf16, #tpu.memory_space<vmem>>, vector<128x128xbf16>
    %cst_28 = arith.constant dense<0.000000e+00> : vector<256x128xf32>
    %56 = tpu.matmul %54, %55, %cst_28 {dimension_numbers = #tpu.dot_dimension_numbers<[1], [0], [0], [1], [0, 0, 1, 1], [], []>} : vector<256x128xbf16>, vector<128x128xbf16>, vector<256x128xf32> -> vector<256x128xf32>
    %c0_29 = arith.constant 0 : index
    %c0_30 = arith.constant 0 : index
    %57 = vector.load %arg8[%c0_29, %c0_30] : memref<1x128xf32, #tpu.memory_space<vmem>>, vector<1x128xf32>
    %58 = vector.broadcast %57 : vector<1x128xf32> to vector<256x128xf32>
    %59 = arith.addf %56, %58 : vector<256x128xf32>
    %c0_31 = arith.constant 0 : index
    %c0_32 = arith.constant 0 : index
    %c0_33 = arith.constant 0 : index
    %60 = vector.load %arg1[%c0_31, %c0_32, %c0_33] : memref<1x128x256xf32, #tpu.memory_space<vmem>>, vector<1x128x256xf32>
    %61 = vector.shape_cast %60 : vector<1x128x256xf32> to vector<128x256xf32>
    %62 = tpu.transpose %59, [1, 0] : vector<256x128xf32> -> vector<128x256xf32>
    %63 = arith.addf %61, %62 : vector<128x256xf32>
    %c0_34 = arith.constant 0 : index
    %c0_35 = arith.constant 0 : index
    %c0_36 = arith.constant 0 : index
    %64 = vector.load %arg9[%c0_34, %c0_35, %c0_36] : memref<1x128x256xf32, #tpu.memory_space<vmem>>, vector<1x128x256xf32>
    %65 = vector.shape_cast %64 : vector<1x128x256xf32> to vector<128x256xf32>
    %66 = vector.shape_cast %63 : vector<128x256xf32> to vector<1x128x256xf32>
    tpu.vector_store %arg9[%c0_34, %c0_35, %c0_36], %66 {strides = array<i32>} : memref<1x128x256xf32, #tpu.memory_space<vmem>>, vector<1x128x256xf32>,
    return
  }
  func.func @transform_0(%arg0: i32) -> (i32, i32, i32) {
    %c0_i32 = arith.constant 0 : i32
    %c0_i32_0 = arith.constant 0 : i32
    %c0_i32_1 = arith.constant 0 : i32
    return %arg0, %c0_i32, %c0_i32_0 : i32, i32, i32
  }
  func.func @transform_1(%arg0: i32) -> (i32, i32) {
    %c0_i32 = arith.constant 0 : i32
    %c0_i32_0 = arith.constant 0 : i32
    %c0_i32_1 = arith.constant 0 : i32
    return %c0_i32, %c0_i32_0 : i32, i32
  }
  func.func @transform_2(%arg0: i32) -> (i32, i32) {
    %c0_i32 = arith.constant 0 : i32
    %c0_i32_0 = arith.constant 0 : i32
    %c0_i32_1 = arith.constant 0 : i32
    return %c0_i32, %c0_i32_0 : i32, i32
  }
  func.func @transform_3(%arg0: i32) -> (i32, i32) {
    %c0_i32 = arith.constant 0 : i32
    %c0_i32_0 = arith.constant 0 : i32
    %c0_i32_1 = arith.constant 0 : i32
    return %c0_i32, %c0_i32_0 : i32, i32
  }
  func.func @transform_4(%arg0: i32) -> (i32, i32) {
    %c0_i32 = arith.constant 0 : i32
    %c0_i32_0 = arith.constant 0 : i32
    %c0_i32_1 = arith.constant 0 : i32
    return %c0_i32, %c0_i32_0 : i32, i32
  }
  func.func @transform_5(%arg0: i32) -> (i32, i32) {
    %c0_i32 = arith.constant 0 : i32
    %c0_i32_0 = arith.constant 0 : i32
    %c0_i32_1 = arith.constant 0 : i32
    return %c0_i32, %c0_i32_0 : i32, i32
  }
  func.func @transform_6(%arg0: i32) -> (i32, i32) {
    %c0_i32 = arith.constant 0 : i32
    %c0_i32_0 = arith.constant 0 : i32
    %c0_i32_1 = arith.constant 0 : i32
    return %c0_i32, %c0_i32_0 : i32, i32
  }
  func.func @transform_7(%arg0: i32) -> (i32, i32) {
    %c0_i32 = arith.constant 0 : i32
    %c0_i32_0 = arith.constant 0 : i32
    %c0_i32_1 = arith.constant 0 : i32
    return %c0_i32, %c0_i32_0 : i32, i32
  }
  func.func @transform_8(%arg0: i32) -> (i32, i32, i32) {
    %c0_i32 = arith.constant 0 : i32
    %c0_i32_0 = arith.constant 0 : i32
    %c0_i32_1 = arith.constant 0 : i32
    return %arg0, %c0_i32, %c0_i32_0 : i32, i32, i32
  }
}

</mosaic_0001>

<llo_original>
// kernel: tpu_custom_call.1
$region0: #{tpu_custom_call.1}
  #allocation0 [shape = 'u32[]', space=smem, size = 0x4, offset = 0x4, fixed_abs, tag = 'smem constant byte address 0x4 - core index']
  #allocation1 [shape = 'u32[144,128]{1,0:T(1,128)}', space=vmem, size = 0x12000, scoped, tag = 'internal scratch']
  %s0 = inlined_call_operand.hbm [shape: f32[2,128,256], index: 0, kind: input, shape index: {}]
  %s1 = inlined_call_operand.vmem [shape: f32[1,128], index: 1, kind: input, shape index: {}]
  %s2 = inlined_call_operand.vmem [shape: f32[1,128], index: 2, kind: input, shape index: {}]
  %s3 = inlined_call_operand.vmem [shape: f32[128,32], index: 3, kind: input, shape index: {}]
  %s4 = inlined_call_operand.hbm [shape: bf16[128,384], index: 4, kind: input, shape index: {}]
  %s5 = inlined_call_operand.vmem [shape: f32[1,384], index: 5, kind: input, shape index: {}]
  %s6 = inlined_call_operand.vmem [shape: bf16[128,128], index: 6, kind: input, shape index: {}]
  %s7 = inlined_call_operand.vmem [shape: f32[1,128], index: 7, kind: input, shape index: {}]
  %s8 = inlined_call_operand.hbm [shape: f32[2,128,256], index: 8, kind: output, shape index: {}]
  %s9 = sld [smem:[#allocation0]]
  $region73: #{tpu_custom_call.1} parent=0
    _
  %s11 = ssub.s32 1, %s9
  %s12 = scalar_select 0, %s11, %s9
  $region1: #{tpu_custom_call.1} parent=0
    #allocation2 [shape = 'u8[262144]{0}', space=vmem, size = 0x40000, scoped, tag = 'input window, operand 0']
    #allocation3 [shape = 's32[2]{0}', space=sflag, size = 0x8, scoped, tag = 'scoped memory for tpu_custom_call.1']
    #allocation4 [shape = 's32[2]{0}', space=sflag, size = 0x8, scoped, tag = 'scoped memory for tpu_custom_call.1']
    #allocation5 [shape = 'u8[98304]{0}', space=vmem, size = 0x18000, scoped, tag = 'input window, operand 4, single buffered']
    #allocation6 [shape = 's32[1]{0}', space=sflag, size = 0x4, scoped, tag = 'scoped memory for tpu_custom_call.1']
    #allocation7 [shape = 'u8[262144]{0}', space=vmem, size = 0x40000, scoped, tag = 'output window, operand 0']
    %13 = vsyncpa [#allocation3], 0
    %s14 = scalar_lea.sflag [#allocation3], 1
    %15 = vsyncpa %s14, 0
    %16 = vsyncpa [#allocation6], 0
    %17 = vsyncpa [#allocation4], 0
    %s18 = scalar_lea.sflag [#allocation4], 1
    %19 = vsyncpa %s18, 0
    loop: start=0, step=1, limit=4
    $region2: #{tpu_custom_call.1} parent=1 // loop_pre_header
      _
    $region3: #{tpu_custom_call.1} parent=1 // loop_header
      %s21 = sphi 0, %s25
      %p22 = scmp.ge.s32.totalorder %s21, 4
      %s31 = sphi 0, %s33
      %s34 = sphi 0, %s31
      %s35 = sphi 0, %s34
      %s51 = sphi 0, %s35
      %s55 = sphi 0, %s55
      %s57 = sphi 0, %s55
      %s58 = sphi 0, %s57
      %s72 = sphi 0, %s58
      %s76 = sphi 0, %s76
      %s78 = sphi 0, %s76
      %s79 = sphi 0, %s78
      %s93 = sphi 0, %s79
      %s97 = sphi 0, %s97
      %s99 = sphi 0, %s97
      %s100 = sphi 0, %s99
      %s114 = sphi 0, %s100
      %s118 = sphi 0, %s118
      %s120 = sphi 0, %s118
      %s121 = sphi 0, %s120
      %s135 = sphi 0, %s121
      %s139 = sphi 0, %s139
      %s141 = sphi 0, %s139
      %s142 = sphi 0, %s141
      %s156 = sphi 0, %s142
      %s160 = sphi 0, %s160
      %s162 = sphi 0, %s160
      %s163 = sphi 0, %s162
      %s177 = sphi 0, %s163
      %s181 = sphi 0, %s181
      %s183 = sphi 0, %s181
      %s184 = sphi 0, %s183
      %s198 = sphi 0, %s184
      %s204 = sphi 0, %s206
      %s207 = sphi 0, %s204
      %s208 = sphi 0, %s207
      %s224 = sphi 0, %s208
    $region4: #{tpu_custom_call.1} parent=1 // loop_header_branch
      %24 = sbr.rel (%p22) target = $region8
    $region5: #{tpu_custom_call.1} parent=1 // loop_body
      %s26 = ssub.s32 %s21, 1
      %s27 = ssub.s32 %s21, 2
      %s28 = sadd.s32 %s21, 1
      %s29 = ssub.s32 %s21, %s28
      %p30 = scmp.eq.s32.totalorder %s29, 0
      %s32 = sadd.s32 %s31, 1
      %s33 = scalar_select %p30, %s31, %s32
      %p36 = pneg %p30
      %p37 = scmp.eq.s32.totalorder %s21, 1
      %p38 = por %p36, %p37
      %p39 = scmp.ne.s32.totalorder %s31, %s34
      %p40 = scmp.eq.s32.totalorder %s21, 0
      %p41 = por %p39, %p40
      %p42 = scmp.ne.s32.totalorder %s31, %s34
      %p43 = scmp.eq.s32.totalorder %s26, 1
      %p44 = por %p42, %p43
      %p45 = scmp.ne.s32.totalorder %s34, %s35
      %p46 = scmp.eq.s32.totalorder %s26, 0
      %p47 = por %p45, %p46
      %p48 = scmp.ne.s32.totalorder %s34, %s35
      %p49 = scmp.eq.s32.totalorder %s27, 1
      %p50 = por %p48, %p49
      %p52 = scmp.ne.s32.totalorder %s35, %s51
      %p53 = scmp.eq.s32.totalorder %s27, 0
      %p54 = por %p52, %p53
      %s56 = sadd.s32 %s55, 1
      %p59 = scmp.eq.s32.totalorder %s21, 1
      %p60 = scmp.ne.s32.totalorder %s55, %s57
      %p61 = scmp.eq.s32.totalorder %s21, 0
      %p62 = por %p60, %p61
      %p63 = scmp.ne.s32.totalorder %s55, %s57
      %p64 = scmp.eq.s32.totalorder %s26, 1
      %p65 = por %p63, %p64
      %p66 = scmp.ne.s32.totalorder %s57, %s58
      %p67 = scmp.eq.s32.totalorder %s26, 0
      %p68 = por %p66, %p67
      %p69 = scmp.ne.s32.totalorder %s57, %s58
      %p70 = scmp.eq.s32.totalorder %s27, 1
      %p71 = por %p69, %p70
      %p73 = scmp.ne.s32.totalorder %s58, %s72
      %p74 = scmp.eq.s32.totalorder %s27, 0
      %p75 = por %p73, %p74
      %s77 = sadd.s32 %s76, 1
      %p80 = scmp.eq.s32.totalorder %s21, 1
      %p81 = scmp.ne.s32.totalorder %s76, %s78
      %p82 = scmp.eq.s32.totalorder %s21, 0
      %p83 = por %p81, %p82
      %p84 = scmp.ne.s32.totalorder %s76, %s78
      %p85 = scmp.eq.s32.totalorder %s26, 1
      %p86 = por %p84, %p85
      %p87 = scmp.ne.s32.totalorder %s78, %s79
      %p88 = scmp.eq.s32.totalorder %s26, 0
      %p89 = por %p87, %p88
      %p90 = scmp.ne.s32.totalorder %s78, %s79
      %p91 = scmp.eq.s32.totalorder %s27, 1
      %p92 = por %p90, %p91
      %p94 = scmp.ne.s32.totalorder %s79, %s93
      %p95 = scmp.eq.s32.totalorder %s27, 0
      %p96 = por %p94, %p95
      %s98 = sadd.s32 %s97, 1
      %p101 = scmp.eq.s32.totalorder %s21, 1
      %p102 = scmp.ne.s32.totalorder %s97, %s99
      %p103 = scmp.eq.s32.totalorder %s21, 0
      %p104 = por %p102, %p103
      %p105 = scmp.ne.s32.totalorder %s97, %s99
      %p106 = scmp.eq.s32.totalorder %s26, 1
      %p107 = por %p105, %p106
      %p108 = scmp.ne.s32.totalorder %s99, %s100
      %p109 = scmp.eq.s32.totalorder %s26, 0
      %p110 = por %p108, %p109
      %p111 = scmp.ne.s32.totalorder %s99, %s100
      %p112 = scmp.eq.s32.totalorder %s27, 1
      %p113 = por %p111, %p112
      %p115 = scmp.ne.s32.totalorder %s100, %s114
      %p116 = scmp.eq.s32.totalorder %s27, 0
      %p117 = por %p115, %p116
      %s119 = sadd.s32 %s118, 1
      %p122 = scmp.eq.s32.totalorder %s21, 1
      %p123 = scmp.ne.s32.totalorder %s118, %s120
      %p124 = scmp.eq.s32.totalorder %s21, 0
      %p125 = por %p123, %p124
      %p126 = scmp.ne.s32.totalorder %s118, %s120
      %p127 = scmp.eq.s32.totalorder %s26, 1
      %p128 = por %p126, %p127
      %p129 = scmp.ne.s32.totalorder %s120, %s121
      %p130 = scmp.eq.s32.totalorder %s26, 0
      %p131 = por %p129, %p130
      %p132 = scmp.ne.s32.totalorder %s120, %s121
      %p133 = scmp.eq.s32.totalorder %s27, 1
      %p134 = por %p132, %p133
      %p136 = scmp.ne.s32.totalorder %s121, %s135
      %p137 = scmp.eq.s32.totalorder %s27, 0
      %p138 = por %p136, %p137
      %s140 = sadd.s32 %s139, 1
      %p143 = scmp.eq.s32.totalorder %s21, 1
      %p144 = scmp.ne.s32.totalorder %s139, %s141
      %p145 = scmp.eq.s32.totalorder %s21, 0
      %p146 = por %p144, %p145
      %p147 = scmp.ne.s32.totalorder %s139, %s141
      %p148 = scmp.eq.s32.totalorder %s26, 1
      %p149 = por %p147, %p148
      %p150 = scmp.ne.s32.totalorder %s141, %s142
      %p151 = scmp.eq.s32.totalorder %s26, 0
      %p152 = por %p150, %p151
      %p153 = scmp.ne.s32.totalorder %s141, %s142
      %p154 = scmp.eq.s32.totalorder %s27, 1
      %p155 = por %p153, %p154
      %p157 = scmp.ne.s32.totalorder %s142, %s156
      %p158 = scmp.eq.s32.totalorder %s27, 0
      %p159 = por %p157, %p158
      %s161 = sadd.s32 %s160, 1
      %p164 = scmp.eq.s32.totalorder %s21, 1
      %p165 = scmp.ne.s32.totalorder %s160, %s162
      %p166 = scmp.eq.s32.totalorder %s21, 0
      %p167 = por %p165, %p166
      %p168 = scmp.ne.s32.totalorder %s160, %s162
      %p169 = scmp.eq.s32.totalorder %s26, 1
      %p170 = por %p168, %p169
      %p171 = scmp.ne.s32.totalorder %s162, %s163
      %p172 = scmp.eq.s32.totalorder %s26, 0
      %p173 = por %p171, %p172
      %p174 = scmp.ne.s32.totalorder %s162, %s163
      %p175 = scmp.eq.s32.totalorder %s27, 1
      %p176 = por %p174, %p175
      %p178 = scmp.ne.s32.totalorder %s163, %s177
      %p179 = scmp.eq.s32.totalorder %s27, 0
      %p180 = por %p178, %p179
      %s182 = sadd.s32 %s181, 1
      %p185 = scmp.eq.s32.totalorder %s21, 1
      %p186 = scmp.ne.s32.totalorder %s181, %s183
      %p187 = scmp.eq.s32.totalorder %s21, 0
      %p188 = por %p186, %p187
      %p189 = scmp.ne.s32.totalorder %s181, %s183
      %p190 = scmp.eq.s32.totalorder %s26, 1
      %p191 = por %p189, %p190
      %p192 = scmp.ne.s32.totalorder %s183, %s184
      %p193 = scmp.eq.s32.totalorder %s26, 0
      %p194 = por %p192, %p193
      %p195 = scmp.ne.s32.totalorder %s183, %s184
      %p196 = scmp.eq.s32.totalorder %s27, 1
      %p197 = por %p195, %p196
      %p199 = scmp.ne.s32.totalorder %s184, %s198
      %p200 = scmp.eq.s32.totalorder %s27, 0
      %p201 = por %p199, %p200
      %s202 = ssub.s32 %s21, %s28
      %p203 = scmp.eq.s32.totalorder %s202, 0
      %s205 = sadd.s32 %s204, 1
      %s206 = scalar_select %p203, %s204, %s205
      %p209 = pneg %p203
      %p210 = scmp.eq.s32.totalorder %s21, 1
      %p211 = por %p209, %p210
      %p212 = scmp.ne.s32.totalorder %s204, %s207
      %p213 = scmp.eq.s32.totalorder %s21, 0
      %p214 = por %p212, %p213
      %p215 = scmp.ne.s32.totalorder %s204, %s207
      %p216 = scmp.eq.s32.totalorder %s26, 1
      %p217 = por %p215, %p216
      %p218 = scmp.ne.s32.totalorder %s207, %s208
      %p219 = scmp.eq.s32.totalorder %s26, 0
      %p220 = por %p218, %p219
      %p221 = scmp.ne.s32.totalorder %s207, %s208
      %p222 = scmp.eq.s32.totalorder %s27, 1
      %p223 = por %p221, %p222
      %p225 = scmp.ne.s32.totalorder %s208, %s224
      %p226 = scmp.eq.s32.totalorder %s27, 0
      %p227 = por %p225, %p226
      %p228 = scmp.le.s32.totalorder 1, %s21
      %p229 = scmp.lt.s32.totalorder %s21, 3
      %p230 = pnand %p228, %p229
      %p231 = pneg %p230
      // Predicated region
      $region9: #{tpu_custom_call.1} parent=5 // pred_check
        _
      $region10: #{tpu_custom_call.1} parent=5 // pred_check_branch
        %233 = sbr.rel (%p230) target = $region12
      $region11: #{tpu_custom_call.1} parent=5 // pred_region
        %s234 = ssub.s32 %s21, 1
        // Predicated region
        $region13: #{tpu_custom_call.1} parent=11 // pred_check
          %p235 = pneg %p68
        $region14: #{tpu_custom_call.1} parent=11 // pred_check_branch
          %237 = sbr.rel (%p235) target = $region16
        $region15: #{tpu_custom_call.1} parent=11 // pred_region
          _
        $region16: #{tpu_custom_call.1} parent=11 // pred_fallthru
          _
        // Predicated region
        $region17: #{tpu_custom_call.1} parent=11 // pred_check
          %p238 = pneg %p89
        $region18: #{tpu_custom_call.1} parent=11 // pred_check_branch
          %240 = sbr.rel (%p238) target = $region20
        $region19: #{tpu_custom_call.1} parent=11 // pred_region
          _
        $region20: #{tpu_custom_call.1} parent=11 // pred_fallthru
          _
        // Predicated region
        $region21: #{tpu_custom_call.1} parent=11 // pred_check
          %p241 = pneg %p110
        $region22: #{tpu_custom_call.1} parent=11 // pred_check_branch
          %243 = sbr.rel (%p241) target = $region24
        $region23: #{tpu_custom_call.1} parent=11 // pred_region
          _
        $region24: #{tpu_custom_call.1} parent=11 // pred_fallthru
          _
        // Predicated region
        $region25: #{tpu_custom_call.1} parent=11 // pred_check
          %p244 = pneg %p131
        $region26: #{tpu_custom_call.1} parent=11 // pred_check_branch
          %246 = sbr.rel (%p244) target = $region28
        $region27: #{tpu_custom_call.1} parent=11 // pred_region
          %s248 = ssub.s32 3072, 3072
          %249 = vsyncadd [#allocation6], %s248
          %s250 = sshll.u32 [#allocation5], 4
          %s251 = int_to_ptr.vmem [resolvable:$true] %s250
          %256 = dma.hbm_to_vmem [thread:$0]  %s4, 3072, %s251, [#allocation6], 192, 192, 12
        $region28: #{tpu_custom_call.1} parent=11 // pred_fallthru
          _
        // Predicated region
        $region29: #{tpu_custom_call.1} parent=11 // pred_check
          %p257 = pneg %p152
        $region30: #{tpu_custom_call.1} parent=11 // pred_check_branch
          %259 = sbr.rel (%p257) target = $region32
        $region31: #{tpu_custom_call.1} parent=11 // pred_region
          _
        $region32: #{tpu_custom_call.1} parent=11 // pred_fallthru
          _
        // Predicated region
        $region33: #{tpu_custom_call.1} parent=11 // pred_check
          %p260 = pneg %p173
        $region34: #{tpu_custom_call.1} parent=11 // pred_check_branch
          %262 = sbr.rel (%p260) target = $region36
        $region35: #{tpu_custom_call.1} parent=11 // pred_region
          _
        $region36: #{tpu_custom_call.1} parent=11 // pred_fallthru
          _
        // Predicated region
        $region37: #{tpu_custom_call.1} parent=11 // pred_check
          %p263 = pneg %p194
        $region38: #{tpu_custom_call.1} parent=11 // pred_check_branch
          %265 = sbr.rel (%p263) target = $region40
        $region39: #{tpu_custom_call.1} parent=11 // pred_region
          _
        $region40: #{tpu_custom_call.1} parent=11 // pred_fallthru
          _
      $region12: #{tpu_custom_call.1} parent=5 // pred_fallthru
        _
      %p266 = scmp.lt.s32.totalorder %s21, 2
      // Predicated region
      $region41: #{tpu_custom_call.1} parent=5 // pred_check
        %p267 = pneg %p266
      $region42: #{tpu_custom_call.1} parent=5 // pred_check_branch
        %269 = sbr.rel (%p267) target = $region44
      $region43: #{tpu_custom_call.1} parent=5 // pred_region
        // Predicated region
        $region45: #{tpu_custom_call.1} parent=43 // pred_check
          %p270 = pneg %p41
        $region46: #{tpu_custom_call.1} parent=43 // pred_check_branch
          %272 = sbr.rel (%p270) target = $region48
        $region47: #{tpu_custom_call.1} parent=43 // pred_region
          %s273 = sand.u32 %s31, 1
          %s274 = scalar_lea.sflag [#allocation3], %s273
          %s275 = sand.u32 %s31, 1
          %s276 = smul.addr %s275, 256
          %s277 = scalar_lea.vmem [#allocation2], %s276
          %s279 = ssub.s32 4096, 4096
          %280 = vsyncadd %s274, %s279
          %s281 = smul.addr %s21, 32
          %s282 = smul.addr %s281, 128
          %s283 = scalar_lea.hbm %s0, %s282
          %s284 = sshll.u32 %s277, 4
          %s285 = int_to_ptr.vmem [resolvable:$true] %s284
          %290 = dma.hbm_to_vmem [thread:$0]  %s283, 4096, %s285, %s274, 256, 256, 16
        $region48: #{tpu_custom_call.1} parent=43 // pred_fallthru
          _
      $region44: #{tpu_custom_call.1} parent=5 // pred_fallthru
        _
      %p291 = scmp.le.s32.totalorder 1, %s21
      %p292 = scmp.lt.s32.totalorder %s21, 3
      %p293 = pnand %p291, %p292
      %p294 = pneg %p293
      // Predicated region
      $region49: #{tpu_custom_call.1} parent=5 // pred_check
        _
      $region50: #{tpu_custom_call.1} parent=5 // pred_check_branch
        %296 = sbr.rel (%p293) target = $region52
      $region51: #{tpu_custom_call.1} parent=5 // pred_region
        %s297 = ssub.s32 %s21, 1
        %s298 = sand.u32 %s34, 1
        %s299 = scalar_lea.sflag [#allocation3], %s298
        %s300 = sand.u32 %s34, 1
        %s301 = smul.addr %s300, 256
        %s302 = scalar_lea.vmem [#allocation2], %s301
        // Predicated region
        $region53: #{tpu_custom_call.1} parent=51 // pred_check
          %p303 = pneg %p47
        $region54: #{tpu_custom_call.1} parent=51 // pred_check_branch
          %305 = sbr.rel (%p303) target = $region56
        $region55: #{tpu_custom_call.1} parent=51 // pred_region
          %306 = dma.done %s299, 4096
        $region56: #{tpu_custom_call.1} parent=51 // pred_fallthru
          _
        // Predicated region
        $region57: #{tpu_custom_call.1} parent=51 // pred_check
          %p307 = pneg %p131
        $region58: #{tpu_custom_call.1} parent=51 // pred_check_branch
          %309 = sbr.rel (%p307) target = $region60
        $region59: #{tpu_custom_call.1} parent=51 // pred_region
          %310 = dma.done [#allocation6], 3072
        $region60: #{tpu_custom_call.1} parent=51 // pred_fallthru
          _
        %s311 = sand.u32 %s34, 1
        %s312 = scalar_lea.sflag [#allocation3], %s311
        %s313 = sand.u32 %s34, 1
        %s314 = smul.addr %s313, 256
        %s315 = scalar_lea.vmem [#allocation2], %s314
        %p316 = pneg %p47
        %p317 = pneg %p44
        %p318 = pneg %p68
        %p319 = pneg %p65
        %p320 = pneg %p89
        %p321 = pneg %p86
        %p322 = pneg %p110
        %p323 = pneg %p107
        %p324 = pneg %p131
        %p325 = pneg %p128
        %p326 = pneg %p152
        %p327 = pneg %p149
        %p328 = pneg %p173
        %p329 = pneg %p170
        %p330 = pneg %p194
        %p331 = pneg %p191
        %p332 = pneg %p220
        %p333 = pneg %p217
        %s334 = sand.u32 %s207, 1
        %s335 = scalar_lea.sflag [#allocation4], %s334
        %s336 = sand.u32 %s207, 1
        %s337 = smul.addr %s336, 256
        %s338 = scalar_lea.vmem [#allocation7], %s337
        %v341 = vld [vmem:[%s302] sm:$0xff]
        %v342 = vld [vmem:[%s302 + $0x8] sm:$0xff]
        %v343 = vld [vmem:[%s302 + $0x10] sm:$0xff]
        %v344 = vld [vmem:[%s302 + $0x18] sm:$0xff]
        %v345 = vld [vmem:[%s302 + $0x20] sm:$0xff]
        %v346 = vld [vmem:[%s302 + $0x28] sm:$0xff]
        %v347 = vld [vmem:[%s302 + $0x30] sm:$0xff]
        %v348 = vld [vmem:[%s302 + $0x38] sm:$0xff]
        %v349 = vld [vmem:[%s302 + $0x40] sm:$0xff]
        %v350 = vld [vmem:[%s302 + $0x48] sm:$0xff]
        %v351 = vld [vmem:[%s302 + $0x50] sm:$0xff]
        %v352 = vld [vmem:[%s302 + $0x58] sm:$0xff]
        %v353 = vld [vmem:[%s302 + $0x60] sm:$0xff]
        %v354 = vld [vmem:[%s302 + $0x68] sm:$0xff]
        %v355 = vld [vmem:[%s302 + $0x70] sm:$0xff]
        %v356 = vld [vmem:[%s302 + $0x78] sm:$0xff]
        %v357 = vld [vmem:[%s302 + $0x80] sm:$0xff]
        %v358 = vld [vmem:[%s302 + $0x88] sm:$0xff]
        %v359 = vld [vmem:[%s302 + $0x90] sm:$0xff]
        %v360 = vld [vmem:[%s302 + $0x98] sm:$0xff]
        %v361 = vld [vmem:[%s302 + $0xa0] sm:$0xff]
        %v362 = vld [vmem:[%s302 + $0xa8] sm:$0xff]
        %v363 = vld [vmem:[%s302 + $0xb0] sm:$0xff]
        %v364 = vld [vmem:[%s302 + $0xb8] sm:$0xff]
        %v365 = vld [vmem:[%s302 + $0xc0] sm:$0xff]
        %v366 = vld [vmem:[%s302 + $0xc8] sm:$0xff]
        %v367 = vld [vmem:[%s302 + $0xd0] sm:$0xff]
        %v368 = vld [vmem:[%s302 + $0xd8] sm:$0xff]
        %v369 = vld [vmem:[%s302 + $0xe0] sm:$0xff]
        %v370 = vld [vmem:[%s302 + $0xe8] sm:$0xff]
        %v371 = vld [vmem:[%s302 + $0xf0] sm:$0xff]
        %v372 = vld [vmem:[%s302 + $0xf8] sm:$0xff]
        %373 = vxpose.xlu0.b32.start [1/16] %v341, 128
        %374 = vxpose.xlu0.b32.cont [2/16] %v343, 128
        %375 = vxpose.xlu0.b32.cont [3/16] %v345, 128
        %376 = vxpose.xlu0.b32.cont [4/16] %v347, 128
        %377 = vxpose.xlu0.b32.cont [5/16] %v349, 128
        %378 = vxpose.xlu0.b32.cont [6/16] %v351, 128
        %379 = vxpose.xlu0.b32.cont [7/16] %v353, 128
        %380 = vxpose.xlu0.b32.cont [8/16] %v355, 128
        %381 = vxpose.xlu0.b32.cont [9/16] %v357, 128
        %382 = vxpose.xlu0.b32.cont [10/16] %v359, 128
        %383 = vxpose.xlu0.b32.cont [11/16] %v361, 128
        %384 = vxpose.xlu0.b32.cont [12/16] %v363, 128
        %385 = vxpose.xlu0.b32.cont [13/16] %v365, 128
        %386 = vxpose.xlu0.b32.cont [14/16] %v367, 128
        %387 = vxpose.xlu0.b32.cont [15/16] %v369, 128
        %388 = vxpose.xlu0.b32.end [16/16] %v371, 128
        %v389 = vpop.trf.xlu0
        %v390 = vpop.trf.xlu0
        %v391 = vpop.trf.xlu0
        %v392 = vpop.trf.xlu0
        %v393 = vpop.trf.xlu0
        %v394 = vpop.trf.xlu0
        %v395 = vpop.trf.xlu0
        %v396 = vpop.trf.xlu0
        %v397 = vpop.trf.xlu0
        %v398 = vpop.trf.xlu0
        %v399 = vpop.trf.xlu0
        %v400 = vpop.trf.xlu0
        %v401 = vpop.trf.xlu0
        %v402 = vpop.trf.xlu0
        %v403 = vpop.trf.xlu0
        %v404 = vpop.trf.xlu0
        %405 = vxpose.xlu0.b32.start [1/16] %v342, 128
        %406 = vxpose.xlu0.b32.cont [2/16] %v344, 128
        %407 = vxpose.xlu0.b32.cont [3/16] %v346, 128
        %408 = vxpose.xlu0.b32.cont [4/16] %v348, 128
        %409 = vxpose.xlu0.b32.cont [5/16] %v350, 128
        %410 = vxpose.xlu0.b32.cont [6/16] %v352, 128
        %411 = vxpose.xlu0.b32.cont [7/16] %v354, 128
        %412 = vxpose.xlu0.b32.cont [8/16] %v356, 128
        %413 = vxpose.xlu0.b32.cont [9/16] %v358, 128
        %414 = vxpose.xlu0.b32.cont [10/16] %v360, 128
        %415 = vxpose.xlu0.b32.cont [11/16] %v362, 128
        %416 = vxpose.xlu0.b32.cont [12/16] %v364, 128
        %417 = vxpose.xlu0.b32.cont [13/16] %v366, 128
        %418 = vxpose.xlu0.b32.cont [14/16] %v368, 128
        %419 = vxpose.xlu0.b32.cont [15/16] %v370, 128
        %420 = vxpose.xlu0.b32.end [16/16] %v372, 128
        %v421 = vpop.trf.xlu0
        %v422 = vpop.trf.xlu0
        %v423 = vpop.trf.xlu0
        %v424 = vpop.trf.xlu0
        %v425 = vpop.trf.xlu0
        %v426 = vpop.trf.xlu0
        %v427 = vpop.trf.xlu0
        %v428 = vpop.trf.xlu0
        %v429 = vpop.trf.xlu0
        %v430 = vpop.trf.xlu0
        %v431 = vpop.trf.xlu0
        %v432 = vpop.trf.xlu0
        %v433 = vpop.trf.xlu0
        %v434 = vpop.trf.xlu0
        %v435 = vpop.trf.xlu0
        %v436 = vpop.trf.xlu0
        %v437 = vadd.f32 %v389, %v390
        %v438 = vadd.f32 %v437, %v391
        %v439 = vadd.f32 %v438, %v392
        %v440 = vadd.f32 %v439, %v393
        %v441 = vadd.f32 %v440, %v394
        %v442 = vadd.f32 %v441, %v395
        %v443 = vadd.f32 %v442, %v396
        %v444 = vadd.f32 %v443, %v397
        %v445 = vadd.f32 %v444, %v398
        %v446 = vadd.f32 %v445, %v399
        %v447 = vadd.f32 %v446, %v400
        %v448 = vadd.f32 %v447, %v401
        %v449 = vadd.f32 %v448, %v402
        %v450 = vadd.f32 %v449, %v403
        %v451 = vadd.f32 %v450, %v404
        %v452 = vadd.f32 %v451, %v421
        %v453 = vadd.f32 %v452, %v422
        %v454 = vadd.f32 %v453, %v423
        %v455 = vadd.f32 %v454, %v424
        %v456 = vadd.f32 %v455, %v425
        %v457 = vadd.f32 %v456, %v426
        %v458 = vadd.f32 %v457, %v427
        %v459 = vadd.f32 %v458, %v428
        %v460 = vadd.f32 %v459, %v429
        %v461 = vadd.f32 %v460, %v430
        %v462 = vadd.f32 %v461, %v431
        %v463 = vadd.f32 %v462, %v432
        %v464 = vadd.f32 %v463, %v433
        %v465 = vadd.f32 %v464, %v434
        %v466 = vadd.f32 %v465, %v435
        %v467 = vadd.f32 %v466, %v436
        %v468 = vrot.slane %v467, 4
        %v469 = vadd.f32 %v467, %v468
        %v470 = vrot.slane %v469, 2
        %v471 = vadd.f32 %v469, %v470
        %v472 = vrot.slane %v471, 1
        %v473 = vadd.f32 %v471, %v472
        %v474 = vmul.f32 %v389, %v389
        %v475 = vmul.f32 %v390, %v390
        %v476 = vmul.f32 %v391, %v391
        %v477 = vmul.f32 %v392, %v392
        %v478 = vmul.f32 %v393, %v393
        %v479 = vmul.f32 %v394, %v394
        %v480 = vmul.f32 %v395, %v395
        %v481 = vmul.f32 %v396, %v396
        %v482 = vmul.f32 %v397, %v397
        %v483 = vmul.f32 %v398, %v398
        %v484 = vmul.f32 %v399, %v399
        %v485 = vmul.f32 %v400, %v400
        %v486 = vmul.f32 %v401, %v401
        %v487 = vmul.f32 %v402, %v402
        %v488 = vmul.f32 %v403, %v403
        %v489 = vmul.f32 %v404, %v404
        %v490 = vmul.f32 %v421, %v421
        %v491 = vmul.f32 %v422, %v422
        %v492 = vmul.f32 %v423, %v423
        %v493 = vmul.f32 %v424, %v424
        %v494 = vmul.f32 %v425, %v425
        %v495 = vmul.f32 %v426, %v426
        %v496 = vmul.f32 %v427, %v427
        %v497 = vmul.f32 %v428, %v428
        %v498 = vmul.f32 %v429, %v429
        %v499 = vmul.f32 %v430, %v430
        %v500 = vmul.f32 %v431, %v431
        %v501 = vmul.f32 %v432, %v432
        %v502 = vmul.f32 %v433, %v433
        %v503 = vmul.f32 %v434, %v434
        %v504 = vmul.f32 %v435, %v435
        %v505 = vmul.f32 %v436, %v436
        %v506 = vadd.f32 %v474, %v475
        %v507 = vadd.f32 %v506, %v476
        %v508 = vadd.f32 %v507, %v477
        %v509 = vadd.f32 %v508, %v478
        %v510 = vadd.f32 %v509, %v479
        %v511 = vadd.f32 %v510, %v480
        %v512 = vadd.f32 %v511, %v481
        %v513 = vadd.f32 %v512, %v482
        %v514 = vadd.f32 %v513, %v483
        %v515 = vadd.f32 %v514, %v484
        %v516 = vadd.f32 %v515, %v485
        %v517 = vadd.f32 %v516, %v486
        %v518 = vadd.f32 %v517, %v487
        %v519 = vadd.f32 %v518, %v488
        %v520 = vadd.f32 %v519, %v489
        %v521 = vadd.f32 %v520, %v490
        %v522 = vadd.f32 %v521, %v491
        %v523 = vadd.f32 %v522, %v492
        %v524 = vadd.f32 %v523, %v493
        %v525 = vadd.f32 %v524, %v494
        %v526 = vadd.f32 %v525, %v495
        %v527 = vadd.f32 %v526, %v496
        %v528 = vadd.f32 %v527, %v497
        %v529 = vadd.f32 %v528, %v498
        %v530 = vadd.f32 %v529, %v499
        %v531 = vadd.f32 %v530, %v500
        %v532 = vadd.f32 %v531, %v501
        %v533 = vadd.f32 %v532, %v502
        %v534 = vadd.f32 %v533, %v503
        %v535 = vadd.f32 %v534, %v504
        %v536 = vadd.f32 %v535, %v505
        %v537 = vrot.slane %v536, 4
        %v538 = vadd.f32 %v536, %v537
        %v539 = vrot.slane %v538, 2
        %v540 = vadd.f32 %v538, %v539
        %v541 = vrot.slane %v540, 1
        %v542 = vadd.f32 %v540, %v541
        %v543 = vld [vmem:[%s3] sm:$0xff]
        %v544 = vld [vmem:[%s3 + $0x8] sm:$0xff]
        %v545 = vld [vmem:[%s3 + $0x10] sm:$0xff]
        %v546 = vld [vmem:[%s3 + $0x18] sm:$0xff]
        %v547 = vld [vmem:[%s3 + $0x20] sm:$0xff]
        %v548 = vld [vmem:[%s3 + $0x28] sm:$0xff]
        %v549 = vld [vmem:[%s3 + $0x30] sm:$0xff]
        %v550 = vld [vmem:[%s3 + $0x38] sm:$0xff]
        %v551 = vld [vmem:[%s3 + $0x40] sm:$0xff]
        %v552 = vld [vmem:[%s3 + $0x48] sm:$0xff]
        %v553 = vld [vmem:[%s3 + $0x50] sm:$0xff]
        %v554 = vld [vmem:[%s3 + $0x58] sm:$0xff]
        %v555 = vld [vmem:[%s3 + $0x60] sm:$0xff]
        %v556 = vld [vmem:[%s3 + $0x68] sm:$0xff]
        %v557 = vld [vmem:[%s3 + $0x70] sm:$0xff]
        %v558 = vld [vmem:[%s3 + $0x78] sm:$0xff]
        %559 = vmatprep.subr.mxu0 0.0
        %560 = vmatpush1.msra.mxu0 %v543
        %561 = vmatprep.subr.mxu0 0.0
        %562 = vmatpush1.msra.mxu0 %v544
        %563 = vmatprep.subr.mxu0 0.0
        %564 = vmatpush1.msra.mxu0 %v545
        %565 = vmatprep.subr.mxu0 0.0
        %566 = vmatpush1.msra.mxu0 %v546
        %567 = vmatprep.subr.mxu0 0.0
        %568 = vmatpush1.msra.mxu0 %v547
        %569 = vmatprep.subr.mxu0 0.0
        %570 = vmatpush1.msra.mxu0 %v548
        %571 = vmatprep.subr.mxu0 0.0
        %572 = vmatpush1.msra.mxu0 %v549
        %573 = vmatprep.subr.mxu0 0.0
        %574 = vmatpush1.msra.mxu0 %v550
        %575 = vmatprep.subr.mxu0 0.0
        %576 = vmatpush1.msra.mxu0 %v551
        %577 = vmatprep.subr.mxu0 0.0
        %578 = vmatpush1.msra.mxu0 %v552
        %579 = vmatprep.subr.mxu0 0.0
        %580 = vmatpush1.msra.mxu0 %v553
        %581 = vmatprep.subr.mxu0 0.0
        %582 = vmatpush1.msra.mxu0 %v554
        %583 = vmatprep.subr.mxu0 0.0
        %584 = vmatpush1.msra.mxu0 %v555
        %585 = vmatprep.subr.mxu0 0.0
        %586 = vmatpush1.msra.mxu0 %v556
        %587 = vmatprep.subr.mxu0 0.0
        %588 = vmatpush1.msra.mxu0 %v557
        %589 = vmatprep.subr.mxu0 0.0
        %590 = vmatpush1.msra.mxu0 %v558
        %591 = vmatprep.subr.mxu0 0.0
        %592 = vmatpush1.msra.mxu0 0.0
        %593 = vmatprep.subr.mxu0 0.0
        %594 = vmatpush1.msra.mxu0 0.0
        %595 = vmatprep.subr.mxu0 0.0
        %596 = vmatpush1.msra.mxu0 0.0
        %597 = vmatprep.subr.mxu0 0.0
        %598 = vmatpush1.msra.mxu0 0.0
        %599 = vmatprep.subr.mxu0 0.0
        %600 = vmatpush1.msra.mxu0 0.0
        %601 = vmatprep.subr.mxu0 0.0
        %602 = vmatpush1.msra.mxu0 0.0
        %603 = vmatprep.subr.mxu0 0.0
        %604 = vmatpush1.msra.mxu0 0.0
        %605 = vmatprep.subr.mxu0 0.0
        %606 = vmatpush1.msra.mxu0 0.0
        %607 = vmatprep.subr.mxu0 0.0
        %608 = vmatpush1.msra.mxu0 0.0
        %609 = vmatprep.subr.mxu0 0.0
        %610 = vmatpush1.msra.mxu0 0.0
        %611 = vmatprep.subr.mxu0 0.0
        %612 = vmatpush1.msra.mxu0 0.0
        %613 = vmatprep.subr.mxu0 0.0
        %614 = vmatpush1.msra.mxu0 0.0
        %615 = vmatprep.subr.mxu0 0.0
        %616 = vmatpush1.msra.mxu0 0.0
        %617 = vmatprep.subr.mxu0 0.0
        %618 = vmatpush1.msra.mxu0 0.0
        %619 = vmatprep.subr.mxu0 0.0
        %620 = vmatpush1.msra.mxu0 0.0
        %621 = vmatprep.subr.mxu0 0.0
        %622 = vmatpush1.msra.mxu0 0.0
        %623 = vmatprep.mubr.f32.mxu0 0.0
        %624 = vmatmul.mubr.f32.gmra.mrb[0].mxu0 %v473
        %v625 = vpop.f32.mrb[0].mxu0
        %v626 = vadd.f32 0.0, %v625
        %v627 = vpop.f32.mrb[0].mxu0
        %628 = vdwg.mxu0
        %629 = vmatprep.subr.mxu0 0.0
        %630 = vmatpush1.msra.mxu0 %v543
        %631 = vmatprep.subr.mxu0 0.0
        %632 = vmatpush1.msra.mxu0 %v544
        %633 = vmatprep.subr.mxu0 0.0
        %634 = vmatpush1.msra.mxu0 %v545
        %635 = vmatprep.subr.mxu0 0.0
        %636 = vmatpush1.msra.mxu0 %v546
        %637 = vmatprep.subr.mxu0 0.0
        %638 = vmatpush1.msra.mxu0 %v547
        %639 = vmatprep.subr.mxu0 0.0
        %640 = vmatpush1.msra.mxu0 %v548
        %641 = vmatprep.subr.mxu0 0.0
        %642 = vmatpush1.msra.mxu0 %v549
        %643 = vmatprep.subr.mxu0 0.0
        %644 = vmatpush1.msra.mxu0 %v550
        %645 = vmatprep.subr.mxu0 0.0
        %646 = vmatpush1.msra.mxu0 %v551
        %647 = vmatprep.subr.mxu0 0.0
        %648 = vmatpush1.msra.mxu0 %v552
        %649 = vmatprep.subr.mxu0 0.0
        %650 = vmatpush1.msra.mxu0 %v553
        %651 = vmatprep.subr.mxu0 0.0
        %652 = vmatpush1.msra.mxu0 %v554
        %653 = vmatprep.subr.mxu0 0.0
        %654 = vmatpush1.msra.mxu0 %v555
        %655 = vmatprep.subr.mxu0 0.0
        %656 = vmatpush1.msra.mxu0 %v556
        %657 = vmatprep.subr.mxu0 0.0
        %658 = vmatpush1.msra.mxu0 %v557
        %659 = vmatprep.subr.mxu0 0.0
        %660 = vmatpush1.msra.mxu0 %v558
        %661 = vmatprep.subr.mxu0 0.0
        %662 = vmatpush1.msra.mxu0 0.0
        %663 = vmatprep.subr.mxu0 0.0
        %664 = vmatpush1.msra.mxu0 0.0
        %665 = vmatprep.subr.mxu0 0.0
        %666 = vmatpush1.msra.mxu0 0.0
        %667 = vmatprep.subr.mxu0 0.0
        %668 = vmatpush1.msra.mxu0 0.0
        %669 = vmatprep.subr.mxu0 0.0
        %670 = vmatpush1.msra.mxu0 0.0
        %671 = vmatprep.subr.mxu0 0.0
        %672 = vmatpush1.msra.mxu0 0.0
        %673 = vmatprep.subr.mxu0 0.0
        %674 = vmatpush1.msra.mxu0 0.0
        %675 = vmatprep.subr.mxu0 0.0
        %676 = vmatpush1.msra.mxu0 0.0
        %677 = vmatprep.subr.mxu0 0.0
        %678 = vmatpush1.msra.mxu0 0.0
        %679 = vmatprep.subr.mxu0 0.0
        %680 = vmatpush1.msra.mxu0 0.0
        %681 = vmatprep.subr.mxu0 0.0
        %682 = vmatpush1.msra.mxu0 0.0
        %683 = vmatprep.subr.mxu0 0.0
        %684 = vmatpush1.msra.mxu0 0.0
        %685 = vmatprep.subr.mxu0 0.0
        %686 = vmatpush1.msra.mxu0 0.0
        %687 = vmatprep.subr.mxu0 0.0
        %688 = vmatpush1.msra.mxu0 0.0
        %689 = vmatprep.subr.mxu0 0.0
        %690 = vmatpush1.msra.mxu0 0.0
        %691 = vmatprep.subr.mxu0 0.0
        %692 = vmatpush1.msra.mxu0 0.0
        %693 = vmatprep.mubr.f32.mxu0 0.0
        %694 = vmatmul.mubr.f32.gmra.mrb[0].mxu0 %v542
        %v695 = vpop.f32.mrb[0].mxu0
        %v696 = vadd.f32 0.0, %v695
        %v697 = vpop.f32.mrb[0].mxu0
        %698 = vdwg.mxu0
        %v699 = vmul.f32 %v626, 0.0009765625
        %v700 = vmul.f32 %v696, 0.0009765625
        %v701 = vmul.f32 %v699, %v699
        %v702 = vsub.f32 %v700, %v701
        %v703 = vadd.f32 %v702, 1e-06
        %v704 = vrsqrt.pop %v703
        %vm705 = vcmask 261120
        %v707 = vsel %vm705, %v699, 0
        %v710 = vsel %vm705, %v543, 0
        %v713 = vsel %vm705, %v544, 0
        %v716 = vsel %vm705, %v545, 0
        %v719 = vsel %vm705, %v546, 0
        %v722 = vsel %vm705, %v547, 0
        %v725 = vsel %vm705, %v548, 0
        %v728 = vsel %vm705, %v549, 0
        %v731 = vsel %vm705, %v550, 0
        %v734 = vsel %vm705, %v551, 0
        %v737 = vsel %vm705, %v552, 0
        %v740 = vsel %vm705, %v553, 0
        %v743 = vsel %vm705, %v554, 0
        %v746 = vsel %vm705, %v555, 0
        %v749 = vsel %vm705, %v556, 0
        %v752 = vsel %vm705, %v557, 0
        %v755 = vsel %vm705, %v558, 0
        %757 = vmatprep.subr.mxu0 0.0
        %758 = vmatpush1.xpose.msra.mxu0 %v710
        %759 = vmatprep.subr.mxu0 0.0
        %760 = vmatpush1.xpose.msra.mxu0 %v713
        %761 = vmatprep.subr.mxu0 0.0
        %762 = vmatpush1.xpose.msra.mxu0 %v716
        %763 = vmatprep.subr.mxu0 0.0
        %764 = vmatpush1.xpose.msra.mxu0 %v719
        %765 = vmatprep.subr.mxu0 0.0
        %766 = vmatpush1.xpose.msra.mxu0 %v722
        %767 = vmatprep.subr.mxu0 0.0
        %768 = vmatpush1.xpose.msra.mxu0 %v725
        %769 = vmatprep.subr.mxu0 0.0
        %770 = vmatpush1.xpose.msra.mxu0 %v728
        %771 = vmatprep.subr.mxu0 0.0
        %772 = vmatpush1.xpose.msra.mxu0 %v731
        %773 = vmatprep.subr.mxu0 0.0
        %774 = vmatpush1.xpose.msra.mxu0 %v734
        %775 = vmatprep.subr.mxu0 0.0
        %776 = vmatpush1.xpose.msra.mxu0 %v737
        %777 = vmatprep.subr.mxu0 0.0
        %778 = vmatpush1.xpose.msra.mxu0 %v740
        %779 = vmatprep.subr.mxu0 0.0
        %780 = vmatpush1.xpose.msra.mxu0 %v743
        %781 = vmatprep.subr.mxu0 0.0
        %782 = vmatpush1.xpose.msra.mxu0 %v746
        %783 = vmatprep.subr.mxu0 0.0
        %784 = vmatpush1.xpose.msra.mxu0 %v749
        %785 = vmatprep.subr.mxu0 0.0
        %786 = vmatpush1.xpose.msra.mxu0 %v752
        %787 = vmatprep.subr.mxu0 0.0
        %788 = vmatpush1.xpose.msra.mxu0 %v755
        %789 = vmatprep.subr.mxu0 0.0
        %790 = vmatpush1.xpose.msra.mxu0 0.0
        %791 = vmatprep.subr.mxu0 0.0
        %792 = vmatpush1.xpose.msra.mxu0 0.0
        %793 = vmatprep.subr.mxu0 0.0
        %794 = vmatpush1.xpose.msra.mxu0 0.0
        %795 = vmatprep.subr.mxu0 0.0
        %796 = vmatpush1.xpose.msra.mxu0 0.0
        %797 = vmatprep.subr.mxu0 0.0
        %798 = vmatpush1.xpose.msra.mxu0 0.0
        %799 = vmatprep.subr.mxu0 0.0
        %800 = vmatpush1.xpose.msra.mxu0 0.0
        %801 = vmatprep.subr.mxu0 0.0
        %802 = vmatpush1.xpose.msra.mxu0 0.0
        %803 = vmatprep.subr.mxu0 0.0
        %804 = vmatpush1.xpose.msra.mxu0 0.0
        %805 = vmatprep.subr.mxu0 0.0
        %806 = vmatpush1.xpose.msra.mxu0 0.0
        %807 = vmatprep.subr.mxu0 0.0
        %808 = vmatpush1.xpose.msra.mxu0 0.0
        %809 = vmatprep.subr.mxu0 0.0
        %810 = vmatpush1.xpose.msra.mxu0 0.0
        %811 = vmatprep.subr.mxu0 0.0
        %812 = vmatpush1.xpose.msra.mxu0 0.0
        %813 = vmatprep.subr.mxu0 0.0
        %814 = vmatpush1.xpose.msra.mxu0 0.0
        %815 = vmatprep.subr.mxu0 0.0
        %816 = vmatpush1.xpose.msra.mxu0 0.0
        %817 = vmatprep.subr.mxu0 0.0
        %818 = vmatpush1.xpose.msra.mxu0 0.0
        %819 = vmatprep.subr.mxu0 0.0
        %820 = vmatpush1.xpose.msra.mxu0 0.0
        %821 = vmatprep.mubr.f32.mxu0 0.0
        %822 = vmatmul.mubr.f32.gmra.mrb[0].mxu0 %v707
        %v823 = vpop.f32.mrb[0].mxu0
        %v824 = vadd.f32 0.0, %v823
        %v825 = vpop.f32.mrb[0].mxu0
        %826 = vdwg.mxu0
        %v828 = vsel %vm705, %v704, 0
        %830 = vmatprep.subr.mxu0 0.0
        %831 = vmatpush1.xpose.msra.mxu0 %v710
        %832 = vmatprep.subr.mxu0 0.0
        %833 = vmatpush1.xpose.msra.mxu0 %v713
        %834 = vmatprep.subr.mxu0 0.0
        %835 = vmatpush1.xpose.msra.mxu0 %v716
        %836 = vmatprep.subr.mxu0 0.0
        %837 = vmatpush1.xpose.msra.mxu0 %v719
        %838 = vmatprep.subr.mxu0 0.0
        %839 = vmatpush1.xpose.msra.mxu0 %v722
        %840 = vmatprep.subr.mxu0 0.0
        %841 = vmatpush1.xpose.msra.mxu0 %v725
        %842 = vmatprep.subr.mxu0 0.0
        %843 = vmatpush1.xpose.msra.mxu0 %v728
        %844 = vmatprep.subr.mxu0 0.0
        %845 = vmatpush1.xpose.msra.mxu0 %v731
        %846 = vmatprep.subr.mxu0 0.0
        %847 = vmatpush1.xpose.msra.mxu0 %v734
        %848 = vmatprep.subr.mxu0 0.0
        %849 = vmatpush1.xpose.msra.mxu0 %v737
        %850 = vmatprep.subr.mxu0 0.0
        %851 = vmatpush1.xpose.msra.mxu0 %v740
        %852 = vmatprep.subr.mxu0 0.0
        %853 = vmatpush1.xpose.msra.mxu0 %v743
        %854 = vmatprep.subr.mxu0 0.0
        %855 = vmatpush1.xpose.msra.mxu0 %v746
        %856 = vmatprep.subr.mxu0 0.0
        %857 = vmatpush1.xpose.msra.mxu0 %v749
        %858 = vmatprep.subr.mxu0 0.0
        %859 = vmatpush1.xpose.msra.mxu0 %v752
        %860 = vmatprep.subr.mxu0 0.0
        %861 = vmatpush1.xpose.msra.mxu0 %v755
        %862 = vmatprep.subr.mxu0 0.0
        %863 = vmatpush1.xpose.msra.mxu0 0.0
        %864 = vmatprep.subr.mxu0 0.0
        %865 = vmatpush1.xpose.msra.mxu0 0.0
        %866 = vmatprep.subr.mxu0 0.0
        %867 = vmatpush1.xpose.msra.mxu0 0.0
        %868 = vmatprep.subr.mxu0 0.0
        %869 = vmatpush1.xpose.msra.mxu0 0.0
        %870 = vmatprep.subr.mxu0 0.0
        %871 = vmatpush1.xpose.msra.mxu0 0.0
        %872 = vmatprep.subr.mxu0 0.0
        %873 = vmatpush1.xpose.msra.mxu0 0.0
        %874 = vmatprep.subr.mxu0 0.0
        %875 = vmatpush1.xpose.msra.mxu0 0.0
        %876 = vmatprep.subr.mxu0 0.0
        %877 = vmatpush1.xpose.msra.mxu0 0.0
        %878 = vmatprep.subr.mxu0 0.0
        %879 = vmatpush1.xpose.msra.mxu0 0.0
        %880 = vmatprep.subr.mxu0 0.0
        %881 = vmatpush1.xpose.msra.mxu0 0.0
        %882 = vmatprep.subr.mxu0 0.0
        %883 = vmatpush1.xpose.msra.mxu0 0.0
        %884 = vmatprep.subr.mxu0 0.0
        %885 = vmatpush1.xpose.msra.mxu0 0.0
        %886 = vmatprep.subr.mxu0 0.0
        %887 = vmatpush1.xpose.msra.mxu0 0.0
        %888 = vmatprep.subr.mxu0 0.0
        %889 = vmatpush1.xpose.msra.mxu0 0.0
        %890 = vmatprep.subr.mxu0 0.0
        %891 = vmatpush1.xpose.msra.mxu0 0.0
        %892 = vmatprep.subr.mxu0 0.0
        %893 = vmatpush1.xpose.msra.mxu0 0.0
        %894 = vmatprep.mubr.f32.mxu0 0.0
        %895 = vmatmul.mubr.f32.gmra.mrb[0].mxu0 %v828
        %v896 = vpop.f32.mrb[0].mxu0
        %v897 = vadd.f32 0.0, %v896
        %v898 = vpop.f32.mrb[0].mxu0
        %899 = vdwg.mxu0
        %v900 = vld [vmem:[%s1] sm:$0x1]
        %v901 = vmul.f32 %v897, %v900
        %v902 = vld [vmem:[%s2] sm:$0x1]
        %v903 = vmul.f32 %v824, %v901
        %v904 = vsub.f32 %v902, %v903
        %v905 = vlaneseq
        %v906 = vshrl.u32 %v905, 7
        %v907 = vsub.s32 0, %v906
        %v908 = vrot.slane %v901, %v907
        %v909 = vmul.f32 %v389, %v908
        %v910 = vmul.f32 %v390, %v908
        %v911 = vmul.f32 %v391, %v908
        %v912 = vmul.f32 %v392, %v908
        %v913 = vmul.f32 %v393, %v908
        %v914 = vmul.f32 %v394, %v908
        %v915 = vmul.f32 %v395, %v908
        %v916 = vmul.f32 %v396, %v908
        %v917 = vmul.f32 %v397, %v908
        %v918 = vmul.f32 %v398, %v908
        %v919 = vmul.f32 %v399, %v908
        %v920 = vmul.f32 %v400, %v908
        %v921 = vmul.f32 %v401, %v908
        %v922 = vmul.f32 %v402, %v908
        %v923 = vmul.f32 %v403, %v908
        %v924 = vmul.f32 %v404, %v908
        %v925 = vmul.f32 %v421, %v908
        %v926 = vmul.f32 %v422, %v908
        %v927 = vmul.f32 %v423, %v908
        %v928 = vmul.f32 %v424, %v908
        %v929 = vmul.f32 %v425, %v908
        %v930 = vmul.f32 %v426, %v908
        %v931 = vmul.f32 %v427, %v908
        %v932 = vmul.f32 %v428, %v908
        %v933 = vmul.f32 %v429, %v908
        %v934 = vmul.f32 %v430, %v908
        %v935 = vmul.f32 %v431, %v908
        %v936 = vmul.f32 %v432, %v908
        %v937 = vmul.f32 %v433, %v908
        %v938 = vmul.f32 %v434, %v908
        %v939 = vmul.f32 %v435, %v908
        %v940 = vmul.f32 %v436, %v908
        %v942 = vlaneseq
        %v943 = vshrl.u32 %v942, 7
        %v944 = vsub.s32 0, %v943
        %v945 = vrot.slane %v904, %v944
        %v947 = vadd.f32 %v909, %v945
        %v948 = vadd.f32 %v910, %v945
        %v949 = vadd.f32 %v911, %v945
        %v950 = vadd.f32 %v912, %v945
        %v951 = vadd.f32 %v913, %v945
        %v952 = vadd.f32 %v914, %v945
        %v953 = vadd.f32 %v915, %v945
        %v954 = vadd.f32 %v916, %v945
        %v955 = vadd.f32 %v917, %v945
        %v956 = vadd.f32 %v918, %v945
        %v957 = vadd.f32 %v919, %v945
        %v958 = vadd.f32 %v920, %v945
        %v959 = vadd.f32 %v921, %v945
        %v960 = vadd.f32 %v922, %v945
        %v961 = vadd.f32 %v923, %v945
        %v962 = vadd.f32 %v924, %v945
        %v963 = vadd.f32 %v925, %v945
        %v964 = vadd.f32 %v926, %v945
        %v965 = vadd.f32 %v927, %v945
        %v966 = vadd.f32 %v928, %v945
        %v967 = vadd.f32 %v929, %v945
        %v968 = vadd.f32 %v930, %v945
        %v969 = vadd.f32 %v931, %v945
        %v970 = vadd.f32 %v932, %v945
        %v971 = vadd.f32 %v933, %v945
        %v972 = vadd.f32 %v934, %v945
        %v973 = vadd.f32 %v935, %v945
        %v974 = vadd.f32 %v936, %v945
        %v975 = vadd.f32 %v937, %v945
        %v976 = vadd.f32 %v938, %v945
        %v977 = vadd.f32 %v939, %v945
        %v978 = vadd.f32 %v940, %v945
        %v979 = vpack.c.bf16 %v948, %v947
        %v980 = vpack.c.bf16 %v950, %v949
        %v981 = vpack.c.bf16 %v952, %v951
        %v982 = vpack.c.bf16 %v954, %v953
        %v983 = vpack.c.bf16 %v956, %v955
        %v984 = vpack.c.bf16 %v958, %v957
        %v985 = vpack.c.bf16 %v960, %v959
        %v986 = vpack.c.bf16 %v962, %v961
        %v987 = vpack.c.bf16 %v964, %v963
        %v988 = vpack.c.bf16 %v966, %v965
        %v989 = vpack.c.bf16 %v968, %v967
        %v990 = vpack.c.bf16 %v970, %v969
        %v991 = vpack.c.bf16 %v972, %v971
        %v992 = vpack.c.bf16 %v974, %v973
        %v993 = vpack.c.bf16 %v976, %v975
        %v994 = vpack.c.bf16 %v978, %v977
        %v995 = vld [vmem:[#allocation5] sm:$0xff]
        %v996 = vld [vmem:[#allocation5 + $0x8] sm:$0xf]
        %v997 = vld [vmem:[#allocation5 + $0xc] sm:$0xff]
        %v998 = vld [vmem:[#allocation5 + $0x14] sm:$0xf]
        %v999 = vld [vmem:[#allocation5 + $0x18] sm:$0xff]
        %v1000 = vld [vmem:[#allocation5 + $0x20] sm:$0xf]
        %v1001 = vld [vmem:[#allocation5 + $0x24] sm:$0xff]
        %v1002 = vld [vmem:[#allocation5 + $0x2c] sm:$0xf]
        %v1003 = vld [vmem:[#allocation5 + $0x30] sm:$0xff]
        %v1004 = vld [vmem:[#allocation5 + $0x38] sm:$0xf]
        %v1005 = vld [vmem:[#allocation5 + $0x3c] sm:$0xff]
        %v1006 = vld [vmem:[#allocation5 + $0x44] sm:$0xf]
        %v1007 = vld [vmem:[#allocation5 + $0x48] sm:$0xff]
        %v1008 = vld [vmem:[#allocation5 + $0x50] sm:$0xf]
        %v1009 = vld [vmem:[#allocation5 + $0x54] sm:$0xff]
        %v1010 = vld [vmem:[#allocation5 + $0x5c] sm:$0xf]
        %v1011 = vld [vmem:[#allocation5 + $0x60] sm:$0xff]
        %v1012 = vld [vmem:[#allocation5 + $0x68] sm:$0xf]
        %v1013 = vld [vmem:[#allocation5 + $0x6c] sm:$0xff]
        %v1014 = vld [vmem:[#allocation5 + $0x74] sm:$0xf]
        %v1015 = vld [vmem:[#allocation5 + $0x78] sm:$0xff]
        %v1016 = vld [vmem:[#allocation5 + $0x80] sm:$0xf]
        %v1017 = vld [vmem:[#allocation5 + $0x84] sm:$0xff]
        %v1018 = vld [vmem:[#allocation5 + $0x8c] sm:$0xf]
        %v1019 = vld [vmem:[#allocation5 + $0x90] sm:$0xff]
        %v1020 = vld [vmem:[#allocation5 + $0x98] sm:$0xf]
        %v1021 = vld [vmem:[#allocation5 + $0x9c] sm:$0xff]
        %v1022 = vld [vmem:[#allocation5 + $0xa4] sm:$0xf]
        %v1023 = vld [vmem:[#allocation5 + $0xa8] sm:$0xff]
        %v1024 = vld [vmem:[#allocation5 + $0xb0] sm:$0xf]
        %v1025 = vld [vmem:[#allocation5 + $0xb4] sm:$0xff]
        %v1026 = vld [vmem:[#allocation5 + $0xbc] sm:$0xf]
        %v1027 = vld [vmem:[%s5] sm:$0x7]
        %v1029 = vlaneseq
        %v1030 = vshrl.u32 %v1029, 7
        %v1031 = vsub.s32 0, %v1030
        %v1032 = vrot.slane %v1027, %v1031
        %v1033 = vlaneseq
        %v1034 = vshrl.u32 %v1033, 7
        %v1035 = vsub.s32 1, %v1034
        %v1036 = vrot.slane %v1027, %v1035
        %v1037 = vlaneseq
        %v1038 = vshrl.u32 %v1037, 7
        %v1039 = vsub.s32 2, %v1038
        %v1040 = vrot.slane %v1027, %v1039
        %v1076 = vunpack.c.l.b16 %v995
        %v1077 = vunpack.c.h.b16 %v995
        %v1078 = vunpack.c.l.b16 %v996
        %v1079 = vunpack.c.l.b16 %v997
        %v1080 = vunpack.c.h.b16 %v997
        %v1081 = vunpack.c.l.b16 %v998
        %v1082 = vunpack.c.l.b16 %v999
        %v1083 = vunpack.c.h.b16 %v999
        %v1084 = vunpack.c.l.b16 %v1000
        %v1085 = vunpack.c.l.b16 %v1001
        %v1086 = vunpack.c.h.b16 %v1001
        %v1087 = vunpack.c.l.b16 %v1002
        %v1088 = vunpack.c.l.b16 %v1003
        %v1089 = vunpack.c.h.b16 %v1003
        %v1090 = vunpack.c.l.b16 %v1004
        %v1091 = vunpack.c.l.b16 %v1005
        %v1092 = vunpack.c.h.b16 %v1005
        %v1093 = vunpack.c.l.b16 %v1006
        %v1094 = vunpack.c.l.b16 %v1007
        %v1095 = vunpack.c.h.b16 %v1007
        %v1096 = vunpack.c.l.b16 %v1008
        %v1097 = vunpack.c.l.b16 %v1009
        %v1098 = vunpack.c.h.b16 %v1009
        %v1099 = vunpack.c.l.b16 %v1010
        %v1100 = vunpack.c.l.b16 %v1011
        %v1101 = vunpack.c.h.b16 %v1011
        %v1102 = vunpack.c.l.b16 %v1012
        %v1103 = vunpack.c.l.b16 %v1013
        %v1104 = vunpack.c.h.b16 %v1013
        %v1105 = vunpack.c.l.b16 %v1014
        %v1106 = vunpack.c.l.b16 %v1015
        %v1107 = vunpack.c.h.b16 %v1015
        %v1108 = vunpack.c.l.b16 %v1016
        %v1109 = vunpack.c.l.b16 %v1017
        %v1110 = vunpack.c.h.b16 %v1017
        %v1111 = vunpack.c.l.b16 %v1018
        %v1112 = vunpack.c.l.b16 %v1019
        %v1113 = vunpack.c.h.b16 %v1019
        %v1114 = vunpack.c.l.b16 %v1020
        %v1115 = vunpack.c.l.b16 %v1021
        %v1116 = vunpack.c.h.b16 %v1021
        %v1117 = vunpack.c.l.b16 %v1022
        %v1118 = vunpack.c.l.b16 %v1023
        %v1119 = vunpack.c.h.b16 %v1023
        %v1120 = vunpack.c.l.b16 %v1024
        %v1121 = vunpack.c.l.b16 %v1025
        %v1122 = vunpack.c.h.b16 %v1025
        %v1123 = vunpack.c.l.b16 %v1026
        %v1124 = vpack.c.b16 %v1079, %v1076
        %v1125 = vpack.c.b16 %v1080, %v1077
        %v1126 = vpack.c.b16 %v1081, %v1078
        %v1127 = vpack.c.b16 %v1085, %v1082
        %v1128 = vpack.c.b16 %v1086, %v1083
        %v1129 = vpack.c.b16 %v1087, %v1084
        %v1130 = vpack.c.b16 %v1091, %v1088
        %v1131 = vpack.c.b16 %v1092, %v1089
        %v1132 = vpack.c.b16 %v1093, %v1090
        %v1133 = vpack.c.b16 %v1097, %v1094
        %v1134 = vpack.c.b16 %v1098, %v1095
        %v1135 = vpack.c.b16 %v1099, %v1096
        %v1136 = vpack.c.b16 %v1103, %v1100
        %v1137 = vpack.c.b16 %v1104, %v1101
        %v1138 = vpack.c.b16 %v1105, %v1102
        %v1139 = vpack.c.b16 %v1109, %v1106
        %v1140 = vpack.c.b16 %v1110, %v1107
        %v1141 = vpack.c.b16 %v1111, %v1108
        %v1142 = vpack.c.b16 %v1115, %v1112
        %v1143 = vpack.c.b16 %v1116, %v1113
        %v1144 = vpack.c.b16 %v1117, %v1114
        %v1145 = vpack.c.b16 %v1121, %v1118
        %v1146 = vpack.c.b16 %v1122, %v1119
        %v1147 = vpack.c.b16 %v1123, %v1120
        %1172 = vmatprep.subr.bf16.mxu0 %v1125
        %1173 = vmatpush1.bf16.msra.mxu0 %v1124
        %1174 = vmatprep.subr.bf16.mxu0 %v1128
        %1175 = vmatpush1.bf16.msra.mxu0 %v1127
        %1176 = vmatprep.subr.bf16.mxu0 %v1131
        %1177 = vmatpush1.bf16.msra.mxu0 %v1130
        %1178 = vmatprep.subr.bf16.mxu0 %v1134
        %1179 = vmatpush1.bf16.msra.mxu0 %v1133
        %1180 = vmatprep.subr.bf16.mxu0 %v1137
        %1181 = vmatpush1.bf16.msra.mxu0 %v1136
        %1182 = vmatprep.subr.bf16.mxu0 %v1140
        %1183 = vmatpush1.bf16.msra.mxu0 %v1139
        %1184 = vmatprep.subr.bf16.mxu0 %v1143
        %1185 = vmatpush1.bf16.msra.mxu0 %v1142
        %1186 = vmatprep.subr.bf16.mxu0 %v1146
        %1187 = vmatpush1.bf16.msra.mxu0 %v1145
        %1188 = vmatprep.subr.bf16.mxu0 0
        %1189 = vmatpush1.bf16.msra.mxu0 0
        %1190 = vmatprep.subr.bf16.mxu0 0
        %1191 = vmatpush1.bf16.msra.mxu0 0
        %1192 = vmatprep.subr.bf16.mxu0 0
        %1193 = vmatpush1.bf16.msra.mxu0 0
        %1194 = vmatprep.subr.bf16.mxu0 0
        %1195 = vmatpush1.bf16.msra.mxu0 0
        %1196 = vmatprep.subr.bf16.mxu0 0
        %1197 = vmatpush1.bf16.msra.mxu0 0
        %1198 = vmatprep.subr.bf16.mxu0 0
        %1199 = vmatpush1.bf16.msra.mxu0 0
        %1200 = vmatprep.subr.bf16.mxu0 0
        %1201 = vmatpush1.bf16.msra.mxu0 0
        %1202 = vmatprep.subr.bf16.mxu0 0
        %1203 = vmatpush1.bf16.msra.mxu0 0
        %1204 = vmatprep.mubr.bf16.mxu0 0
        %1205 = vmatmul.mubr.bf16.gmra.mrb[0].mxu0 %v979
        %v1206 = vpop.f32.mrb[0].mxu0
        %v1207 = vadd.f32 %v1032, %v1206
        %v1208 = vpop.f32.mrb[0].mxu0
        %v1209 = vadd.f32 %v1036, %v1208
        %v1210 = vpop.f32.mrb[0].mxu0
        %v1211 = vadd.f32 %v1032, %v1210
        %v1212 = vpop.f32.mrb[0].mxu0
        %v1213 = vadd.f32 %v1036, %v1212
        %1214 = vmatprep.mubr.bf16.mxu0 0
        %1215 = vmatmul.mubr.bf16.gmra.mrb[0].mxu0 %v980
        %v1216 = vpop.f32.mrb[0].mxu0
        %v1217 = vadd.f32 %v1032, %v1216
        %v1218 = vpop.f32.mrb[0].mxu0
        %v1219 = vadd.f32 %v1036, %v1218
        %v1220 = vpop.f32.mrb[0].mxu0
        %v1221 = vadd.f32 %v1032, %v1220
        %v1222 = vpop.f32.mrb[0].mxu0
        %v1223 = vadd.f32 %v1036, %v1222
        %1224 = vmatprep.mubr.bf16.mxu0 0
        %1225 = vmatmul.mubr.bf16.gmra.mrb[0].mxu0 %v981
        %v1226 = vpop.f32.mrb[0].mxu0
        %v1227 = vadd.f32 %v1032, %v1226
        %v1228 = vpop.f32.mrb[0].mxu0
        %v1229 = vadd.f32 %v1036, %v1228
        %v1230 = vpop.f32.mrb[0].mxu0
        %v1231 = vadd.f32 %v1032, %v1230
        %v1232 = vpop.f32.mrb[0].mxu0
        %v1233 = vadd.f32 %v1036, %v1232
        %1234 = vmatprep.mubr.bf16.mxu0 0
        %1235 = vmatmul.mubr.bf16.gmra.mrb[0].mxu0 %v982
        %v1236 = vpop.f32.mrb[0].mxu0
        %v1237 = vadd.f32 %v1032, %v1236
        %v1238 = vpop.f32.mrb[0].mxu0
        %v1239 = vadd.f32 %v1036, %v1238
        %v1240 = vpop.f32.mrb[0].mxu0
        %v1241 = vadd.f32 %v1032, %v1240
        %v1242 = vpop.f32.mrb[0].mxu0
        %v1243 = vadd.f32 %v1036, %v1242
        %1244 = vmatprep.mubr.bf16.mxu0 0
        %1245 = vmatmul.mubr.bf16.gmra.mrb[0].mxu0 %v983
        %v1246 = vpop.f32.mrb[0].mxu0
        %v1247 = vadd.f32 %v1032, %v1246
        %v1248 = vpop.f32.mrb[0].mxu0
        %v1249 = vadd.f32 %v1036, %v1248
        %v1250 = vpop.f32.mrb[0].mxu0
        %v1251 = vadd.f32 %v1032, %v1250
        %v1252 = vpop.f32.mrb[0].mxu0
        %v1253 = vadd.f32 %v1036, %v1252
        %1254 = vmatprep.mubr.bf16.mxu0 0
        %1255 = vmatmul.mubr.bf16.gmra.mrb[0].mxu0 %v984
        %v1256 = vpop.f32.mrb[0].mxu0
        %v1257 = vadd.f32 %v1032, %v1256
        %v1258 = vpop.f32.mrb[0].mxu0
        %v1259 = vadd.f32 %v1036, %v1258
        %v1260 = vpop.f32.mrb[0].mxu0
        %v1261 = vadd.f32 %v1032, %v1260
        %v1262 = vpop.f32.mrb[0].mxu0
        %v1263 = vadd.f32 %v1036, %v1262
        %1264 = vmatprep.mubr.bf16.mxu0 0
        %1265 = vmatmul.mubr.bf16.gmra.mrb[0].mxu0 %v985
        %v1266 = vpop.f32.mrb[0].mxu0
        %v1267 = vadd.f32 %v1032, %v1266
        %v1268 = vpop.f32.mrb[0].mxu0
        %v1269 = vadd.f32 %v1036, %v1268
        %v1270 = vpop.f32.mrb[0].mxu0
        %v1271 = vadd.f32 %v1032, %v1270
        %v1272 = vpop.f32.mrb[0].mxu0
        %v1273 = vadd.f32 %v1036, %v1272
        %1274 = vmatprep.mubr.bf16.mxu0 0
        %1275 = vmatmul.mubr.bf16.gmra.mrb[0].mxu0 %v986
        %v1276 = vpop.f32.mrb[0].mxu0
        %v1277 = vadd.f32 %v1032, %v1276
        %v1278 = vpop.f32.mrb[0].mxu0
        %v1279 = vadd.f32 %v1036, %v1278
        %v1280 = vpop.f32.mrb[0].mxu0
        %v1281 = vadd.f32 %v1032, %v1280
        %v1282 = vpop.f32.mrb[0].mxu0
        %v1283 = vadd.f32 %v1036, %v1282
        %1284 = vmatprep.mubr.bf16.mxu0 0
        %1285 = vmatmul.mubr.bf16.gmra.mrb[0].mxu0 %v987
        %v1286 = vpop.f32.mrb[0].mxu0
        %v1287 = vadd.f32 %v1032, %v1286
        %v1288 = vpop.f32.mrb[0].mxu0
        %v1289 = vadd.f32 %v1036, %v1288
        %v1290 = vpop.f32.mrb[0].mxu0
        %v1291 = vadd.f32 %v1032, %v1290
        %v1292 = vpop.f32.mrb[0].mxu0
        %v1293 = vadd.f32 %v1036, %v1292
        %1294 = vmatprep.mubr.bf16.mxu0 0
        %1295 = vmatmul.mubr.bf16.gmra.mrb[0].mxu0 %v988
        %v1296 = vpop.f32.mrb[0].mxu0
        %v1297 = vadd.f32 %v1032, %v1296
        %v1298 = vpop.f32.mrb[0].mxu0
        %v1299 = vadd.f32 %v1036, %v1298
        %v1300 = vpop.f32.mrb[0].mxu0
        %v1301 = vadd.f32 %v1032, %v1300
        %v1302 = vpop.f32.mrb[0].mxu0
        %v1303 = vadd.f32 %v1036, %v1302
        %1304 = vmatprep.mubr.bf16.mxu0 0
        %1305 = vmatmul.mubr.bf16.gmra.mrb[0].mxu0 %v989
        %v1306 = vpop.f32.mrb[0].mxu0
        %v1307 = vadd.f32 %v1032, %v1306
        %v1308 = vpop.f32.mrb[0].mxu0
        %v1309 = vadd.f32 %v1036, %v1308
        %v1310 = vpop.f32.mrb[0].mxu0
        %v1311 = vadd.f32 %v1032, %v1310
        %v1312 = vpop.f32.mrb[0].mxu0
        %v1313 = vadd.f32 %v1036, %v1312
        %1314 = vmatprep.mubr.bf16.mxu0 0
        %1315 = vmatmul.mubr.bf16.gmra.mrb[0].mxu0 %v990
        %v1316 = vpop.f32.mrb[0].mxu0
        %v1317 = vadd.f32 %v1032, %v1316
        %v1318 = vpop.f32.mrb[0].mxu0
        %v1319 = vadd.f32 %v1036, %v1318
        %v1320 = vpop.f32.mrb[0].mxu0
        %v1321 = vadd.f32 %v1032, %v1320
        %v1322 = vpop.f32.mrb[0].mxu0
        %v1323 = vadd.f32 %v1036, %v1322
        %1324 = vmatprep.mubr.bf16.mxu0 0
        %1325 = vmatmul.mubr.bf16.gmra.mrb[0].mxu0 %v991
        %v1326 = vpop.f32.mrb[0].mxu0
        %v1327 = vadd.f32 %v1032, %v1326
        %v1328 = vpop.f32.mrb[0].mxu0
        %v1329 = vadd.f32 %v1036, %v1328
        %v1330 = vpop.f32.mrb[0].mxu0
        %v1331 = vadd.f32 %v1032, %v1330
        %v1332 = vpop.f32.mrb[0].mxu0
        %v1333 = vadd.f32 %v1036, %v1332
        %1334 = vmatprep.mubr.bf16.mxu0 0
        %1335 = vmatmul.mubr.bf16.gmra.mrb[0].mxu0 %v992
        %v1336 = vpop.f32.mrb[0].mxu0
        %v1337 = vadd.f32 %v1032, %v1336
        %v1338 = vpop.f32.mrb[0].mxu0
        %v1339 = vadd.f32 %v1036, %v1338
        %v1340 = vpop.f32.mrb[0].mxu0
        %v1341 = vadd.f32 %v1032, %v1340
        %v1342 = vpop.f32.mrb[0].mxu0
        %v1343 = vadd.f32 %v1036, %v1342
        %1344 = vmatprep.mubr.bf16.mxu0 0
        %1345 = vmatmul.mubr.bf16.gmra.mrb[0].mxu0 %v993
        %v1346 = vpop.f32.mrb[0].mxu0
        %v1347 = vadd.f32 %v1032, %v1346
        %v1348 = vpop.f32.mrb[0].mxu0
        %v1349 = vadd.f32 %v1036, %v1348
        %v1350 = vpop.f32.mrb[0].mxu0
        %v1351 = vadd.f32 %v1032, %v1350
        %v1352 = vpop.f32.mrb[0].mxu0
        %v1353 = vadd.f32 %v1036, %v1352
        %1354 = vmatprep.mubr.bf16.mxu0 0
        %1355 = vmatmul.mubr.bf16.gmra.mrb[0].mxu0 %v994
        %v1356 = vpop.f32.mrb[0].mxu0
        %v1357 = vadd.f32 %v1032, %v1356
        %v1358 = vpop.f32.mrb[0].mxu0
        %v1359 = vadd.f32 %v1036, %v1358
        %v1360 = vpop.f32.mrb[0].mxu0
        %v1361 = vadd.f32 %v1032, %v1360
        %v1362 = vpop.f32.mrb[0].mxu0
        %v1363 = vadd.f32 %v1036, %v1362
        %1364 = vdwg.mxu0
        %1365 = vmatprep.subr.bf16.mxu0 0
        %1366 = vmatpush1.bf16.msra.mxu0 %v1126
        %1367 = vmatprep.subr.bf16.mxu0 0
        %1368 = vmatpush1.bf16.msra.mxu0 %v1129
        %1369 = vmatprep.subr.bf16.mxu0 0
        %1370 = vmatpush1.bf16.msra.mxu0 %v1132
        %1371 = vmatprep.subr.bf16.mxu0 0
        %1372 = vmatpush1.bf16.msra.mxu0 %v1135
        %1373 = vmatprep.subr.bf16.mxu0 0
        %1374 = vmatpush1.bf16.msra.mxu0 %v1138
        %1375 = vmatprep.subr.bf16.mxu0 0
        %1376 = vmatpush1.bf16.msra.mxu0 %v1141
        %1377 = vmatprep.subr.bf16.mxu0 0
        %1378 = vmatpush1.bf16.msra.mxu0 %v1144
        %1379 = vmatprep.subr.bf16.mxu0 0
        %1380 = vmatpush1.bf16.msra.mxu0 %v1147
        %1381 = vmatprep.subr.bf16.mxu0 0
        %1382 = vmatpush1.bf16.msra.mxu0 0
        %1383 = vmatprep.subr.bf16.mxu0 0
        %1384 = vmatpush1.bf16.msra.mxu0 0
        %1385 = vmatprep.subr.bf16.mxu0 0
        %1386 = vmatpush1.bf16.msra.mxu0 0
        %1387 = vmatprep.subr.bf16.mxu0 0
        %1388 = vmatpush1.bf16.msra.mxu0 0
        %1389 = vmatprep.subr.bf16.mxu0 0
        %1390 = vmatpush1.bf16.msra.mxu0 0
        %1391 = vmatprep.subr.bf16.mxu0 0
        %1392 = vmatpush1.bf16.msra.mxu0 0
        %1393 = vmatprep.subr.bf16.mxu0 0
        %1394 = vmatpush1.bf16.msra.mxu0 0
        %1395 = vmatprep.subr.bf16.mxu0 0
        %1396 = vmatpush1.bf16.msra.mxu0 0
        %1397 = vmatprep.mubr.bf16.mxu0 0
        %1398 = vmatmul.mubr.bf16.gmra.mrb[0].mxu0 %v979
        %v1399 = vpop.f32.mrb[0].mxu0
        %v1400 = vadd.f32 %v1040, %v1399
        %v1401 = vpop.f32.mrb[0].mxu0
        %v1402 = vpop.f32.mrb[0].mxu0
        %v1403 = vadd.f32 %v1040, %v1402
        %v1404 = vpop.f32.mrb[0].mxu0
        %1405 = vmatprep.mubr.bf16.mxu0 0
        %1406 = vmatmul.mubr.bf16.gmra.mrb[0].mxu0 %v980
        %v1407 = vpop.f32.mrb[0].mxu0
        %v1408 = vadd.f32 %v1040, %v1407
        %v1409 = vpop.f32.mrb[0].mxu0
        %v1410 = vpop.f32.mrb[0].mxu0
        %v1411 = vadd.f32 %v1040, %v1410
        %v1412 = vpop.f32.mrb[0].mxu0
        %1413 = vmatprep.mubr.bf16.mxu0 0
        %1414 = vmatmul.mubr.bf16.gmra.mrb[0].mxu0 %v981
        %v1415 = vpop.f32.mrb[0].mxu0
        %v1416 = vadd.f32 %v1040, %v1415
        %v1417 = vpop.f32.mrb[0].mxu0
        %v1418 = vpop.f32.mrb[0].mxu0
        %v1419 = vadd.f32 %v1040, %v1418
        %v1420 = vpop.f32.mrb[0].mxu0
        %1421 = vmatprep.mubr.bf16.mxu0 0
        %1422 = vmatmul.mubr.bf16.gmra.mrb[0].mxu0 %v982
        %v1423 = vpop.f32.mrb[0].mxu0
        %v1424 = vadd.f32 %v1040, %v1423
        %v1425 = vpop.f32.mrb[0].mxu0
        %v1426 = vpop.f32.mrb[0].mxu0
        %v1427 = vadd.f32 %v1040, %v1426
        %v1428 = vpop.f32.mrb[0].mxu0
        %1429 = vmatprep.mubr.bf16.mxu0 0
        %1430 = vmatmul.mubr.bf16.gmra.mrb[0].mxu0 %v983
        %v1431 = vpop.f32.mrb[0].mxu0
        %v1432 = vadd.f32 %v1040, %v1431
        %v1433 = vpop.f32.mrb[0].mxu0
        %v1434 = vpop.f32.mrb[0].mxu0
        %v1435 = vadd.f32 %v1040, %v1434
        %v1436 = vpop.f32.mrb[0].mxu0
        %1437 = vmatprep.mubr.bf16.mxu0 0
        %1438 = vmatmul.mubr.bf16.gmra.mrb[0].mxu0 %v984
        %v1439 = vpop.f32.mrb[0].mxu0
        %v1440 = vadd.f32 %v1040, %v1439
        %v1441 = vpop.f32.mrb[0].mxu0
        %v1442 = vpop.f32.mrb[0].mxu0
        %v1443 = vadd.f32 %v1040, %v1442
        %v1444 = vpop.f32.mrb[0].mxu0
        %1445 = vmatprep.mubr.bf16.mxu0 0
        %1446 = vmatmul.mubr.bf16.gmra.mrb[0].mxu0 %v985
        %v1447 = vpop.f32.mrb[0].mxu0
        %v1448 = vadd.f32 %v1040, %v1447
        %v1449 = vpop.f32.mrb[0].mxu0
        %v1450 = vpop.f32.mrb[0].mxu0
        %v1451 = vadd.f32 %v1040, %v1450
        %v1452 = vpop.f32.mrb[0].mxu0
        %1453 = vmatprep.mubr.bf16.mxu0 0
        %1454 = vmatmul.mubr.bf16.gmra.mrb[0].mxu0 %v986
        %v1455 = vpop.f32.mrb[0].mxu0
        %v1456 = vadd.f32 %v1040, %v1455
        %v1457 = vpop.f32.mrb[0].mxu0
        %v1458 = vpop.f32.mrb[0].mxu0
        %v1459 = vadd.f32 %v1040, %v1458
        %v1460 = vpop.f32.mrb[0].mxu0
        %1461 = vmatprep.mubr.bf16.mxu0 0
        %1462 = vmatmul.mubr.bf16.gmra.mrb[0].mxu0 %v987
        %v1463 = vpop.f32.mrb[0].mxu0
        %v1464 = vadd.f32 %v1040, %v1463
        %v1465 = vpop.f32.mrb[0].mxu0
        %v1466 = vpop.f32.mrb[0].mxu0
        %v1467 = vadd.f32 %v1040, %v1466
        %v1468 = vpop.f32.mrb[0].mxu0
        %1469 = vmatprep.mubr.bf16.mxu0 0
        %1470 = vmatmul.mubr.bf16.gmra.mrb[0].mxu0 %v988
        %v1471 = vpop.f32.mrb[0].mxu0
        %v1472 = vadd.f32 %v1040, %v1471
        %v1473 = vpop.f32.mrb[0].mxu0
        %v1474 = vpop.f32.mrb[0].mxu0
        %v1475 = vadd.f32 %v1040, %v1474
        %v1476 = vpop.f32.mrb[0].mxu0
        %1477 = vmatprep.mubr.bf16.mxu0 0
        %1478 = vmatmul.mubr.bf16.gmra.mrb[0].mxu0 %v989
        %v1479 = vpop.f32.mrb[0].mxu0
        %v1480 = vadd.f32 %v1040, %v1479
        %v1481 = vpop.f32.mrb[0].mxu0
        %v1482 = vpop.f32.mrb[0].mxu0
        %v1483 = vadd.f32 %v1040, %v1482
        %v1484 = vpop.f32.mrb[0].mxu0
        %1485 = vmatprep.mubr.bf16.mxu0 0
        %1486 = vmatmul.mubr.bf16.gmra.mrb[0].mxu0 %v990
        %v1487 = vpop.f32.mrb[0].mxu0
        %v1488 = vadd.f32 %v1040, %v1487
        %v1489 = vpop.f32.mrb[0].mxu0
        %v1490 = vpop.f32.mrb[0].mxu0
        %v1491 = vadd.f32 %v1040, %v1490
        %v1492 = vpop.f32.mrb[0].mxu0
        %1493 = vmatprep.mubr.bf16.mxu0 0
        %1494 = vmatmul.mubr.bf16.gmra.mrb[0].mxu0 %v991
        %v1495 = vpop.f32.mrb[0].mxu0
        %v1496 = vadd.f32 %v1040, %v1495
        %v1497 = vpop.f32.mrb[0].mxu0
        %v1498 = vpop.f32.mrb[0].mxu0
        %v1499 = vadd.f32 %v1040, %v1498
        %v1500 = vpop.f32.mrb[0].mxu0
        %1501 = vmatprep.mubr.bf16.mxu0 0
        %1502 = vmatmul.mubr.bf16.gmra.mrb[0].mxu0 %v992
        %v1503 = vpop.f32.mrb[0].mxu0
        %v1504 = vadd.f32 %v1040, %v1503
        %v1505 = vpop.f32.mrb[0].mxu0
        %v1506 = vpop.f32.mrb[0].mxu0
        %v1507 = vadd.f32 %v1040, %v1506
        %v1508 = vpop.f32.mrb[0].mxu0
        %1509 = vmatprep.mubr.bf16.mxu0 0
        %1510 = vmatmul.mubr.bf16.gmra.mrb[0].mxu0 %v993
        %v1511 = vpop.f32.mrb[0].mxu0
        %v1512 = vadd.f32 %v1040, %v1511
        %v1513 = vpop.f32.mrb[0].mxu0
        %v1514 = vpop.f32.mrb[0].mxu0
        %v1515 = vadd.f32 %v1040, %v1514
        %v1516 = vpop.f32.mrb[0].mxu0
        %1517 = vmatprep.mubr.bf16.mxu0 0
        %1518 = vmatmul.mubr.bf16.gmra.mrb[0].mxu0 %v994
        %v1519 = vpop.f32.mrb[0].mxu0
        %v1520 = vadd.f32 %v1040, %v1519
        %v1521 = vpop.f32.mrb[0].mxu0
        %v1522 = vpop.f32.mrb[0].mxu0
        %v1523 = vadd.f32 %v1040, %v1522
        %v1524 = vpop.f32.mrb[0].mxu0
        %1525 = vdwg.mxu0
        %v1526 = vpack.c.bf16 %v1211, %v1207
        %v1527 = vpack.c.bf16 %v1213, %v1209
        %v1528 = vpack.c.bf16 %v1403, %v1400
        %v1529 = vpack.c.bf16 %v1221, %v1217
        %v1530 = vpack.c.bf16 %v1223, %v1219
        %v1531 = vpack.c.bf16 %v1411, %v1408
        %v1532 = vpack.c.bf16 %v1231, %v1227
        %v1533 = vpack.c.bf16 %v1233, %v1229
        %v1534 = vpack.c.bf16 %v1419, %v1416
        %v1535 = vpack.c.bf16 %v1241, %v1237
        %v1536 = vpack.c.bf16 %v1243, %v1239
        %v1537 = vpack.c.bf16 %v1427, %v1424
        %v1538 = vpack.c.bf16 %v1251, %v1247
        %v1539 = vpack.c.bf16 %v1253, %v1249
        %v1540 = vpack.c.bf16 %v1435, %v1432
        %v1541 = vpack.c.bf16 %v1261, %v1257
        %v1542 = vpack.c.bf16 %v1263, %v1259
        %v1543 = vpack.c.bf16 %v1443, %v1440
        %v1544 = vpack.c.bf16 %v1271, %v1267
        %v1545 = vpack.c.bf16 %v1273, %v1269
        %v1546 = vpack.c.bf16 %v1451, %v1448
        %v1547 = vpack.c.bf16 %v1281, %v1277
        %v1548 = vpack.c.bf16 %v1283, %v1279
        %v1549 = vpack.c.bf16 %v1459, %v1456
        %v1550 = vpack.c.bf16 %v1291, %v1287
        %v1551 = vpack.c.bf16 %v1293, %v1289
        %v1552 = vpack.c.bf16 %v1467, %v1464
        %v1553 = vpack.c.bf16 %v1301, %v1297
        %v1554 = vpack.c.bf16 %v1303, %v1299
        %v1555 = vpack.c.bf16 %v1475, %v1472
        %v1556 = vpack.c.bf16 %v1311, %v1307
        %v1557 = vpack.c.bf16 %v1313, %v1309
        %v1558 = vpack.c.bf16 %v1483, %v1480
        %v1559 = vpack.c.bf16 %v1321, %v1317
        %v1560 = vpack.c.bf16 %v1323, %v1319
        %v1561 = vpack.c.bf16 %v1491, %v1488
        %v1562 = vpack.c.bf16 %v1331, %v1327
        %v1563 = vpack.c.bf16 %v1333, %v1329
        %v1564 = vpack.c.bf16 %v1499, %v1496
        %v1565 = vpack.c.bf16 %v1341, %v1337
        %v1566 = vpack.c.bf16 %v1343, %v1339
        %v1567 = vpack.c.bf16 %v1507, %v1504
        %v1568 = vpack.c.bf16 %v1351, %v1347
        %v1569 = vpack.c.bf16 %v1353, %v1349
        %v1570 = vpack.c.bf16 %v1515, %v1512
        %v1571 = vpack.c.bf16 %v1361, %v1357
        %v1572 = vpack.c.bf16 %v1363, %v1359
        %v1573 = vpack.c.bf16 %v1523, %v1520
        %1574 = vmatprep.subr.bf16.mxu0 0
        %1575 = vmatpush1.bf16.xpose.msra.mxu0 %v1527
        %1576 = vmatprep.subr.bf16.mxu0 0
        %1577 = vmatpush1.bf16.xpose.msra.mxu0 %v1530
        %1578 = vmatprep.subr.bf16.mxu0 0
        %1579 = vmatpush1.bf16.xpose.msra.mxu0 %v1533
        %1580 = vmatprep.subr.bf16.mxu0 0
        %1581 = vmatpush1.bf16.xpose.msra.mxu0 %v1536
        %1582 = vmatprep.subr.bf16.mxu0 0
        %1583 = vmatpush1.bf16.xpose.msra.mxu0 %v1539
        %1584 = vmatprep.subr.bf16.mxu0 0
        %1585 = vmatpush1.bf16.xpose.msra.mxu0 %v1542
        %1586 = vmatprep.subr.bf16.mxu0 0
        %1587 = vmatpush1.bf16.xpose.msra.mxu0 %v1545
        %1588 = vmatprep.subr.bf16.mxu0 0
        %1589 = vmatpush1.bf16.xpose.msra.mxu0 %v1548
        %1590 = vmatprep.subr.bf16.mxu0 0
        %1591 = vmatpush1.bf16.xpose.msra.mxu0 %v1551
        %1592 = vmatprep.subr.bf16.mxu0 0
        %1593 = vmatpush1.bf16.xpose.msra.mxu0 %v1554
        %1594 = vmatprep.subr.bf16.mxu0 0
        %1595 = vmatpush1.bf16.xpose.msra.mxu0 %v1557
        %1596 = vmatprep.subr.bf16.mxu0 0
        %1597 = vmatpush1.bf16.xpose.msra.mxu0 %v1560
        %1598 = vmatprep.subr.bf16.mxu0 0
        %1599 = vmatpush1.bf16.xpose.msra.mxu0 %v1563
        %1600 = vmatprep.subr.bf16.mxu0 0
        %1601 = vmatpush1.bf16.xpose.msra.mxu0 %v1566
        %1602 = vmatprep.subr.bf16.mxu0 0
        %1603 = vmatpush1.bf16.xpose.msra.mxu0 %v1569
        %1604 = vmatprep.subr.bf16.mxu0 0
        %1605 = vmatpush1.bf16.xpose.msra.mxu0 %v1572
        %1606 = vmatprep.mubr.bf16.mxu0 0
        %1607 = vmatmul.mubr.bf16.gmra.mrb[0].mxu0 %v1526
        %v1608 = vpop.f32.mrb[0].mxu0
        %v1609 = vadd.f32 0.0, %v1608
        %v1610 = vpop.f32.mrb[0].mxu0
        %v1611 = vadd.f32 0.0, %v1610
        %v1612 = vpop.f32.mrb[0].mxu0
        %v1613 = vadd.f32 0.0, %v1612
        %v1614 = vpop.f32.mrb[0].mxu0
        %v1615 = vadd.f32 0.0, %v1614
        %1616 = vmatprep.mubr.bf16.mxu0 0
        %1617 = vmatmul.mubr.bf16.gmra.mrb[0].mxu0 %v1529
        %v1618 = vpop.f32.mrb[0].mxu0
        %v1619 = vadd.f32 0.0, %v1618
        %v1620 = vpop.f32.mrb[0].mxu0
        %v1621 = vadd.f32 0.0, %v1620
        %v1622 = vpop.f32.mrb[0].mxu0
        %v1623 = vadd.f32 0.0, %v1622
        %v1624 = vpop.f32.mrb[0].mxu0
        %v1625 = vadd.f32 0.0, %v1624
        %1626 = vmatprep.mubr.bf16.mxu0 0
        %1627 = vmatmul.mubr.bf16.gmra.mrb[0].mxu0 %v1532
        %v1628 = vpop.f32.mrb[0].mxu0
        %v1629 = vadd.f32 0.0, %v1628
        %v1630 = vpop.f32.mrb[0].mxu0
        %v1631 = vadd.f32 0.0, %v1630
        %v1632 = vpop.f32.mrb[0].mxu0
        %v1633 = vadd.f32 0.0, %v1632
        %v1634 = vpop.f32.mrb[0].mxu0
        %v1635 = vadd.f32 0.0, %v1634
        %1636 = vmatprep.mubr.bf16.mxu0 0
        %1637 = vmatmul.mubr.bf16.gmra.mrb[0].mxu0 %v1535
        %v1638 = vpop.f32.mrb[0].mxu0
        %v1639 = vadd.f32 0.0, %v1638
        %v1640 = vpop.f32.mrb[0].mxu0
        %v1641 = vadd.f32 0.0, %v1640
        %v1642 = vpop.f32.mrb[0].mxu0
        %v1643 = vadd.f32 0.0, %v1642
        %v1644 = vpop.f32.mrb[0].mxu0
        %v1645 = vadd.f32 0.0, %v1644
        %1646 = vmatprep.mubr.bf16.mxu0 0
        %1647 = vmatmul.mubr.bf16.gmra.mrb[0].mxu0 %v1538
        %v1648 = vpop.f32.mrb[0].mxu0
        %v1649 = vadd.f32 0.0, %v1648
        %v1650 = vpop.f32.mrb[0].mxu0
        %v1651 = vadd.f32 0.0, %v1650
        %v1652 = vpop.f32.mrb[0].mxu0
        %v1653 = vadd.f32 0.0, %v1652
        %v1654 = vpop.f32.mrb[0].mxu0
        %v1655 = vadd.f32 0.0, %v1654
        %1656 = vmatprep.mubr.bf16.mxu0 0
        %1657 = vmatmul.mubr.bf16.gmra.mrb[0].mxu0 %v1541
        %v1658 = vpop.f32.mrb[0].mxu0
        %v1659 = vadd.f32 0.0, %v1658
        %v1660 = vpop.f32.mrb[0].mxu0
        %v1661 = vadd.f32 0.0, %v1660
        %v1662 = vpop.f32.mrb[0].mxu0
        %v1663 = vadd.f32 0.0, %v1662
        %v1664 = vpop.f32.mrb[0].mxu0
        %v1665 = vadd.f32 0.0, %v1664
        %1666 = vmatprep.mubr.bf16.mxu0 0
        %1667 = vmatmul.mubr.bf16.gmra.mrb[0].mxu0 %v1544
        %v1668 = vpop.f32.mrb[0].mxu0
        %v1669 = vadd.f32 0.0, %v1668
        %v1670 = vpop.f32.mrb[0].mxu0
        %v1671 = vadd.f32 0.0, %v1670
        %v1672 = vpop.f32.mrb[0].mxu0
        %v1673 = vadd.f32 0.0, %v1672
        %v1674 = vpop.f32.mrb[0].mxu0
        %v1675 = vadd.f32 0.0, %v1674
        %1676 = vmatprep.mubr.bf16.mxu0 0
        %1677 = vmatmul.mubr.bf16.gmra.mrb[0].mxu0 %v1547
        %v1678 = vpop.f32.mrb[0].mxu0
        %v1679 = vadd.f32 0.0, %v1678
        %v1680 = vpop.f32.mrb[0].mxu0
        %v1681 = vadd.f32 0.0, %v1680
        %v1682 = vpop.f32.mrb[0].mxu0
        %v1683 = vadd.f32 0.0, %v1682
        %v1684 = vpop.f32.mrb[0].mxu0
        %v1685 = vadd.f32 0.0, %v1684
        %1686 = vmatprep.mubr.bf16.mxu0 0
        %1687 = vmatmul.mubr.bf16.gmra.mrb[0].mxu0 %v1550
        %v1688 = vpop.f32.mrb[0].mxu0
        %v1689 = vadd.f32 0.0, %v1688
        %v1690 = vpop.f32.mrb[0].mxu0
        %v1691 = vadd.f32 0.0, %v1690
        %v1692 = vpop.f32.mrb[0].mxu0
        %v1693 = vadd.f32 0.0, %v1692
        %v1694 = vpop.f32.mrb[0].mxu0
        %v1695 = vadd.f32 0.0, %v1694
        %1696 = vmatprep.mubr.bf16.mxu0 0
        %1697 = vmatmul.mubr.bf16.gmra.mrb[0].mxu0 %v1553
        %v1698 = vpop.f32.mrb[0].mxu0
        %v1699 = vadd.f32 0.0, %v1698
        %v1700 = vpop.f32.mrb[0].mxu0
        %v1701 = vadd.f32 0.0, %v1700
        %v1702 = vpop.f32.mrb[0].mxu0
        %v1703 = vadd.f32 0.0, %v1702
        %v1704 = vpop.f32.mrb[0].mxu0
        %v1705 = vadd.f32 0.0, %v1704
        %1706 = vmatprep.mubr.bf16.mxu0 0
        %1707 = vmatmul.mubr.bf16.gmra.mrb[0].mxu0 %v1556
        %v1708 = vpop.f32.mrb[0].mxu0
        %v1709 = vadd.f32 0.0, %v1708
        %v1710 = vpop.f32.mrb[0].mxu0
        %v1711 = vadd.f32 0.0, %v1710
        %v1712 = vpop.f32.mrb[0].mxu0
        %v1713 = vadd.f32 0.0, %v1712
        %v1714 = vpop.f32.mrb[0].mxu0
        %v1715 = vadd.f32 0.0, %v1714
        %1716 = vmatprep.mubr.bf16.mxu0 0
        %1717 = vmatmul.mubr.bf16.gmra.mrb[0].mxu0 %v1559
        %v1718 = vpop.f32.mrb[0].mxu0
        %v1719 = vadd.f32 0.0, %v1718
        %v1720 = vpop.f32.mrb[0].mxu0
        %v1721 = vadd.f32 0.0, %v1720
        %v1722 = vpop.f32.mrb[0].mxu0
        %v1723 = vadd.f32 0.0, %v1722
        %v1724 = vpop.f32.mrb[0].mxu0
        %v1725 = vadd.f32 0.0, %v1724
        %1726 = vmatprep.mubr.bf16.mxu0 0
        %1727 = vmatmul.mubr.bf16.gmra.mrb[0].mxu0 %v1562
        %v1728 = vpop.f32.mrb[0].mxu0
        %v1729 = vadd.f32 0.0, %v1728
        %v1730 = vpop.f32.mrb[0].mxu0
        %v1731 = vadd.f32 0.0, %v1730
        %v1732 = vpop.f32.mrb[0].mxu0
        %v1733 = vadd.f32 0.0, %v1732
        %v1734 = vpop.f32.mrb[0].mxu0
        %v1735 = vadd.f32 0.0, %v1734
        %1736 = vmatprep.mubr.bf16.mxu0 0
        %1737 = vmatmul.mubr.bf16.gmra.mrb[0].mxu0 %v1565
        %v1738 = vpop.f32.mrb[0].mxu0
        %v1739 = vadd.f32 0.0, %v1738
        %v1740 = vpop.f32.mrb[0].mxu0
        %v1741 = vadd.f32 0.0, %v1740
        %v1742 = vpop.f32.mrb[0].mxu0
        %v1743 = vadd.f32 0.0, %v1742
        %v1744 = vpop.f32.mrb[0].mxu0
        %v1745 = vadd.f32 0.0, %v1744
        %1746 = vmatprep.mubr.bf16.mxu0 0
        %1747 = vmatmul.mubr.bf16.gmra.mrb[0].mxu0 %v1568
        %v1748 = vpop.f32.mrb[0].mxu0
        %v1749 = vadd.f32 0.0, %v1748
        %v1750 = vpop.f32.mrb[0].mxu0
        %v1751 = vadd.f32 0.0, %v1750
        %v1752 = vpop.f32.mrb[0].mxu0
        %v1753 = vadd.f32 0.0, %v1752
        %v1754 = vpop.f32.mrb[0].mxu0
        %v1755 = vadd.f32 0.0, %v1754
        %1756 = vmatprep.mubr.bf16.mxu0 0
        %1757 = vmatmul.mubr.bf16.gmra.mrb[0].mxu0 %v1571
        %v1758 = vpop.f32.mrb[0].mxu0
        %v1759 = vadd.f32 0.0, %v1758
        %v1760 = vpop.f32.mrb[0].mxu0
        %v1761 = vadd.f32 0.0, %v1760
        %v1762 = vpop.f32.mrb[0].mxu0
        %v1763 = vadd.f32 0.0, %v1762
        %v1764 = vpop.f32.mrb[0].mxu0
        %v1765 = vadd.f32 0.0, %v1764
        %1766 = vdwg.mxu0
        %v1767 = vmax.f32 %v1609, %v1611
        %1768 = vmax.xlane.f32.xlu0 %v1767
        %v1769 = vpop.xlane.xlu0 %1768
        %v1770 = vmax.f32 %v1613, %v1615
        %1771 = vmax.xlane.f32.xlu0 %v1770
        %v1772 = vpop.xlane.xlu0 %1771
        %v1773 = vmax.f32 %v1619, %v1621
        %1774 = vmax.xlane.f32.xlu0 %v1773
        %v1775 = vpop.xlane.xlu0 %1774
        %v1776 = vmax.f32 %v1623, %v1625
        %1777 = vmax.xlane.f32.xlu0 %v1776
        %v1778 = vpop.xlane.xlu0 %1777
        %v1779 = vmax.f32 %v1629, %v1631
        %1780 = vmax.xlane.f32.xlu0 %v1779
        %v1781 = vpop.xlane.xlu0 %1780
        %v1782 = vmax.f32 %v1633, %v1635
        %1783 = vmax.xlane.f32.xlu0 %v1782
        %v1784 = vpop.xlane.xlu0 %1783
        %v1785 = vmax.f32 %v1639, %v1641
        %1786 = vmax.xlane.f32.xlu0 %v1785
        %v1787 = vpop.xlane.xlu0 %1786
        %v1788 = vmax.f32 %v1643, %v1645
        %1789 = vmax.xlane.f32.xlu0 %v1788
        %v1790 = vpop.xlane.xlu0 %1789
        %v1791 = vmax.f32 %v1649, %v1651
        %1792 = vmax.xlane.f32.xlu0 %v1791
        %v1793 = vpop.xlane.xlu0 %1792
        %v1794 = vmax.f32 %v1653, %v1655
        %1795 = vmax.xlane.f32.xlu0 %v1794
        %v1796 = vpop.xlane.xlu0 %1795
        %v1797 = vmax.f32 %v1659, %v1661
        %1798 = vmax.xlane.f32.xlu0 %v1797
        %v1799 = vpop.xlane.xlu0 %1798
        %v1800 = vmax.f32 %v1663, %v1665
        %1801 = vmax.xlane.f32.xlu0 %v1800
        %v1802 = vpop.xlane.xlu0 %1801
        %v1803 = vmax.f32 %v1669, %v1671
        %1804 = vmax.xlane.f32.xlu0 %v1803
        %v1805 = vpop.xlane.xlu0 %1804
        %v1806 = vmax.f32 %v1673, %v1675
        %1807 = vmax.xlane.f32.xlu0 %v1806
        %v1808 = vpop.xlane.xlu0 %1807
        %v1809 = vmax.f32 %v1679, %v1681
        %1810 = vmax.xlane.f32.xlu0 %v1809
        %v1811 = vpop.xlane.xlu0 %1810
        %v1812 = vmax.f32 %v1683, %v1685
        %1813 = vmax.xlane.f32.xlu0 %v1812
        %v1814 = vpop.xlane.xlu0 %1813
        %v1815 = vmax.f32 %v1689, %v1691
        %1816 = vmax.xlane.f32.xlu0 %v1815
        %v1817 = vpop.xlane.xlu0 %1816
        %v1818 = vmax.f32 %v1693, %v1695
        %1819 = vmax.xlane.f32.xlu0 %v1818
        %v1820 = vpop.xlane.xlu0 %1819
        %v1821 = vmax.f32 %v1699, %v1701
        %1822 = vmax.xlane.f32.xlu0 %v1821
        %v1823 = vpop.xlane.xlu0 %1822
        %v1824 = vmax.f32 %v1703, %v1705
        %1825 = vmax.xlane.f32.xlu0 %v1824
        %v1826 = vpop.xlane.xlu0 %1825
        %v1827 = vmax.f32 %v1709, %v1711
        %1828 = vmax.xlane.f32.xlu0 %v1827
        %v1829 = vpop.xlane.xlu0 %1828
        %v1830 = vmax.f32 %v1713, %v1715
        %1831 = vmax.xlane.f32.xlu0 %v1830
        %v1832 = vpop.xlane.xlu0 %1831
        %v1833 = vmax.f32 %v1719, %v1721
        %1834 = vmax.xlane.f32.xlu0 %v1833
        %v1835 = vpop.xlane.xlu0 %1834
        %v1836 = vmax.f32 %v1723, %v1725
        %1837 = vmax.xlane.f32.xlu0 %v1836
        %v1838 = vpop.xlane.xlu0 %1837
        %v1839 = vmax.f32 %v1729, %v1731
        %1840 = vmax.xlane.f32.xlu0 %v1839
        %v1841 = vpop.xlane.xlu0 %1840
        %v1842 = vmax.f32 %v1733, %v1735
        %1843 = vmax.xlane.f32.xlu0 %v1842
        %v1844 = vpop.xlane.xlu0 %1843
        %v1845 = vmax.f32 %v1739, %v1741
        %1846 = vmax.xlane.f32.xlu0 %v1845
        %v1847 = vpop.xlane.xlu0 %1846
        %v1848 = vmax.f32 %v1743, %v1745
        %1849 = vmax.xlane.f32.xlu0 %v1848
        %v1850 = vpop.xlane.xlu0 %1849
        %v1851 = vmax.f32 %v1749, %v1751
        %1852 = vmax.xlane.f32.xlu0 %v1851
        %v1853 = vpop.xlane.xlu0 %1852
        %v1854 = vmax.f32 %v1753, %v1755
        %1855 = vmax.xlane.f32.xlu0 %v1854
        %v1856 = vpop.xlane.xlu0 %1855
        %v1857 = vmax.f32 %v1759, %v1761
        %1858 = vmax.xlane.f32.xlu0 %v1857
        %v1859 = vpop.xlane.xlu0 %1858
        %v1860 = vmax.f32 %v1763, %v1765
        %1861 = vmax.xlane.f32.xlu0 %v1860
        %v1862 = vpop.xlane.xlu0 %1861
        %v1863 = vsub.f32 %v1609, %v1769
        %v1864 = vsub.f32 %v1611, %v1769
        %v1865 = vsub.f32 %v1613, %v1772
        %v1866 = vsub.f32 %v1615, %v1772
        %v1867 = vsub.f32 %v1619, %v1775
        %v1868 = vsub.f32 %v1621, %v1775
        %v1869 = vsub.f32 %v1623, %v1778
        %v1870 = vsub.f32 %v1625, %v1778
        %v1871 = vsub.f32 %v1629, %v1781
        %v1872 = vsub.f32 %v1631, %v1781
        %v1873 = vsub.f32 %v1633, %v1784
        %v1874 = vsub.f32 %v1635, %v1784
        %v1875 = vsub.f32 %v1639, %v1787
        %v1876 = vsub.f32 %v1641, %v1787
        %v1877 = vsub.f32 %v1643, %v1790
        %v1878 = vsub.f32 %v1645, %v1790
        %v1879 = vsub.f32 %v1649, %v1793
        %v1880 = vsub.f32 %v1651, %v1793
        %v1881 = vsub.f32 %v1653, %v1796
        %v1882 = vsub.f32 %v1655, %v1796
        %v1883 = vsub.f32 %v1659, %v1799
        %v1884 = vsub.f32 %v1661, %v1799
        %v1885 = vsub.f32 %v1663, %v1802
        %v1886 = vsub.f32 %v1665, %v1802
        %v1887 = vsub.f32 %v1669, %v1805
        %v1888 = vsub.f32 %v1671, %v1805
        %v1889 = vsub.f32 %v1673, %v1808
        %v1890 = vsub.f32 %v1675, %v1808
        %v1891 = vsub.f32 %v1679, %v1811
        %v1892 = vsub.f32 %v1681, %v1811
        %v1893 = vsub.f32 %v1683, %v1814
        %v1894 = vsub.f32 %v1685, %v1814
        %v1895 = vsub.f32 %v1689, %v1817
        %v1896 = vsub.f32 %v1691, %v1817
        %v1897 = vsub.f32 %v1693, %v1820
        %v1898 = vsub.f32 %v1695, %v1820
        %v1899 = vsub.f32 %v1699, %v1823
        %v1900 = vsub.f32 %v1701, %v1823
        %v1901 = vsub.f32 %v1703, %v1826
        %v1902 = vsub.f32 %v1705, %v1826
        %v1903 = vsub.f32 %v1709, %v1829
        %v1904 = vsub.f32 %v1711, %v1829
        %v1905 = vsub.f32 %v1713, %v1832
        %v1906 = vsub.f32 %v1715, %v1832
        %v1907 = vsub.f32 %v1719, %v1835
        %v1908 = vsub.f32 %v1721, %v1835
        %v1909 = vsub.f32 %v1723, %v1838
        %v1910 = vsub.f32 %v1725, %v1838
        %v1911 = vsub.f32 %v1729, %v1841
        %v1912 = vsub.f32 %v1731, %v1841
        %v1913 = vsub.f32 %v1733, %v1844
        %v1914 = vsub.f32 %v1735, %v1844
        %v1915 = vsub.f32 %v1739, %v1847
        %v1916 = vsub.f32 %v1741, %v1847
        %v1917 = vsub.f32 %v1743, %v1850
        %v1918 = vsub.f32 %v1745, %v1850
        %v1919 = vsub.f32 %v1749, %v1853
        %v1920 = vsub.f32 %v1751, %v1853
        %v1921 = vsub.f32 %v1753, %v1856
        %v1922 = vsub.f32 %v1755, %v1856
        %v1923 = vsub.f32 %v1759, %v1859
        %v1924 = vsub.f32 %v1761, %v1859
        %v1925 = vsub.f32 %v1763, %v1862
        %v1926 = vsub.f32 %v1765, %v1862
        %v1927 = vpack.c.bf16 %v1865, %v1863
        %v1928 = vpack.c.bf16 %v1866, %v1864
        %v1929 = vpack.c.bf16 %v1869, %v1867
        %v1930 = vpack.c.bf16 %v1870, %v1868
        %v1931 = vpack.c.bf16 %v1873, %v1871
        %v1932 = vpack.c.bf16 %v1874, %v1872
        %v1933 = vpack.c.bf16 %v1877, %v1875
        %v1934 = vpack.c.bf16 %v1878, %v1876
        %v1935 = vpack.c.bf16 %v1881, %v1879
        %v1936 = vpack.c.bf16 %v1882, %v1880
        %v1937 = vpack.c.bf16 %v1885, %v1883
        %v1938 = vpack.c.bf16 %v1886, %v1884
        %v1939 = vpack.c.bf16 %v1889, %v1887
        %v1940 = vpack.c.bf16 %v1890, %v1888
        %v1941 = vpack.c.bf16 %v1893, %v1891
        %v1942 = vpack.c.bf16 %v1894, %v1892
        %v1943 = vpack.c.bf16 %v1897, %v1895
        %v1944 = vpack.c.bf16 %v1898, %v1896
        %v1945 = vpack.c.bf16 %v1901, %v1899
        %v1946 = vpack.c.bf16 %v1902, %v1900
        %v1947 = vpack.c.bf16 %v1905, %v1903
        %v1948 = vpack.c.bf16 %v1906, %v1904
        %v1949 = vpack.c.bf16 %v1909, %v1907
        %v1950 = vpack.c.bf16 %v1910, %v1908
        %v1951 = vpack.c.bf16 %v1913, %v1911
        %v1952 = vpack.c.bf16 %v1914, %v1912
        %v1953 = vpack.c.bf16 %v1917, %v1915
        %v1954 = vpack.c.bf16 %v1918, %v1916
        %v1955 = vpack.c.bf16 %v1921, %v1919
        %v1956 = vpack.c.bf16 %v1922, %v1920
        %v1957 = vpack.c.bf16 %v1925, %v1923
        %v1958 = vpack.c.bf16 %v1926, %v1924
        %v1960 = vmul.bf16 %v1927, 1069105081
        %v1961 = vpow.bf16.pop %v1960
        %v1963 = vmul.bf16 %v1928, 1069105081
        %v1964 = vpow.bf16.pop %v1963
        %v1966 = vmul.bf16 %v1929, 1069105081
        %v1967 = vpow.bf16.pop %v1966
        %v1969 = vmul.bf16 %v1930, 1069105081
        %v1970 = vpow.bf16.pop %v1969
        %v1972 = vmul.bf16 %v1931, 1069105081
        %v1973 = vpow.bf16.pop %v1972
        %v1975 = vmul.bf16 %v1932, 1069105081
        %v1976 = vpow.bf16.pop %v1975
        %v1978 = vmul.bf16 %v1933, 1069105081
        %v1979 = vpow.bf16.pop %v1978
        %v1981 = vmul.bf16 %v1934, 1069105081
        %v1982 = vpow.bf16.pop %v1981
        %v1984 = vmul.bf16 %v1935, 1069105081
        %v1985 = vpow.bf16.pop %v1984
        %v1987 = vmul.bf16 %v1936, 1069105081
        %v1988 = vpow.bf16.pop %v1987
        %v1990 = vmul.bf16 %v1937, 1069105081
        %v1991 = vpow.bf16.pop %v1990
        %v1993 = vmul.bf16 %v1938, 1069105081
        %v1994 = vpow.bf16.pop %v1993
        %v1996 = vmul.bf16 %v1939, 1069105081
        %v1997 = vpow.bf16.pop %v1996
        %v1999 = vmul.bf16 %v1940, 1069105081
        %v2000 = vpow.bf16.pop %v1999
        %v2002 = vmul.bf16 %v1941, 1069105081
        %v2003 = vpow.bf16.pop %v2002
        %v2005 = vmul.bf16 %v1942, 1069105081
        %v2006 = vpow.bf16.pop %v2005
        %v2008 = vmul.bf16 %v1943, 1069105081
        %v2009 = vpow.bf16.pop %v2008
        %v2011 = vmul.bf16 %v1944, 1069105081
        %v2012 = vpow.bf16.pop %v2011
        %v2014 = vmul.bf16 %v1945, 1069105081
        %v2015 = vpow.bf16.pop %v2014
        %v2017 = vmul.bf16 %v1946, 1069105081
        %v2018 = vpow.bf16.pop %v2017
        %v2020 = vmul.bf16 %v1947, 1069105081
        %v2021 = vpow.bf16.pop %v2020
        %v2023 = vmul.bf16 %v1948, 1069105081
        %v2024 = vpow.bf16.pop %v2023
        %v2026 = vmul.bf16 %v1949, 1069105081
        %v2027 = vpow.bf16.pop %v2026
        %v2029 = vmul.bf16 %v1950, 1069105081
        %v2030 = vpow.bf16.pop %v2029
        %v2032 = vmul.bf16 %v1951, 1069105081
        %v2033 = vpow.bf16.pop %v2032
        %v2035 = vmul.bf16 %v1952, 1069105081
        %v2036 = vpow.bf16.pop %v2035
        %v2038 = vmul.bf16 %v1953, 1069105081
        %v2039 = vpow.bf16.pop %v2038
        %v2041 = vmul.bf16 %v1954, 1069105081
        %v2042 = vpow.bf16.pop %v2041
        %v2044 = vmul.bf16 %v1955, 1069105081
        %v2045 = vpow.bf16.pop %v2044
        %v2047 = vmul.bf16 %v1956, 1069105081
        %v2048 = vpow.bf16.pop %v2047
        %v2050 = vmul.bf16 %v1957, 1069105081
        %v2051 = vpow.bf16.pop %v2050
        %v2053 = vmul.bf16 %v1958, 1069105081
        %v2054 = vpow.bf16.pop %v2053
        %2055 = vmatprep.subr.bf16.mxu0 0
        %2056 = vmatpush1.bf16.msra.mxu0 1065369472
        %2057 = vmatprep.subr.bf16.mxu0 0
        %2058 = vmatpush1.bf16.msra.mxu0 1065369472
        %2059 = vmatprep.subr.bf16.mxu0 0
        %2060 = vmatpush1.bf16.msra.mxu0 1065369472
        %2061 = vmatprep.subr.bf16.mxu0 0
        %2062 = vmatpush1.bf16.msra.mxu0 1065369472
        %2063 = vmatprep.subr.bf16.mxu0 0
        %2064 = vmatpush1.bf16.msra.mxu0 1065369472
        %2065 = vmatprep.subr.bf16.mxu0 0
        %2066 = vmatpush1.bf16.msra.mxu0 1065369472
        %2067 = vmatprep.subr.bf16.mxu0 0
        %2068 = vmatpush1.bf16.msra.mxu0 1065369472
        %2069 = vmatprep.subr.bf16.mxu0 0
        %2070 = vmatpush1.bf16.msra.mxu0 1065369472
        %2071 = vmatprep.subr.bf16.mxu0 0
        %2072 = vmatpush1.bf16.msra.mxu0 1065369472
        %2073 = vmatprep.subr.bf16.mxu0 0
        %2074 = vmatpush1.bf16.msra.mxu0 1065369472
        %2075 = vmatprep.subr.bf16.mxu0 0
        %2076 = vmatpush1.bf16.msra.mxu0 1065369472
        %2077 = vmatprep.subr.bf16.mxu0 0
        %2078 = vmatpush1.bf16.msra.mxu0 1065369472
        %2079 = vmatprep.subr.bf16.mxu0 0
        %2080 = vmatpush1.bf16.msra.mxu0 1065369472
        %2081 = vmatprep.subr.bf16.mxu0 0
        %2082 = vmatpush1.bf16.msra.mxu0 1065369472
        %2083 = vmatprep.subr.bf16.mxu0 0
        %2084 = vmatpush1.bf16.msra.mxu0 1065369472
        %2085 = vmatprep.subr.bf16.mxu0 0
        %2086 = vmatpush1.bf16.msra.mxu0 1065369472
        %2087 = vmatprep.mubr.bf16.mxu0 %v1964
        %2088 = vmatmul.mubr.bf16.gmra.mrb[0].mxu0 %v1961
        %v2089 = vpop.f32.mrb[0].mxu0
        %v2090 = vadd.f32 0.0, %v2089
        %v2091 = vpop.f32.mrb[0].mxu0
        %v2092 = vpop.f32.mrb[0].mxu0
        %v2093 = vadd.f32 0.0, %v2092
        %v2094 = vpop.f32.mrb[0].mxu0
        %2095 = vmatprep.mubr.bf16.mxu0 %v1970
        %2096 = vmatmul.mubr.bf16.gmra.mrb[0].mxu0 %v1967
        %v2097 = vpop.f32.mrb[0].mxu0
        %v2098 = vadd.f32 0.0, %v2097
        %v2099 = vpop.f32.mrb[0].mxu0
        %v2100 = vpop.f32.mrb[0].mxu0
        %v2101 = vadd.f32 0.0, %v2100
        %v2102 = vpop.f32.mrb[0].mxu0
        %2103 = vmatprep.mubr.bf16.mxu0 %v1976
        %2104 = vmatmul.mubr.bf16.gmra.mrb[0].mxu0 %v1973
        %v2105 = vpop.f32.mrb[0].mxu0
        %v2106 = vadd.f32 0.0, %v2105
        %v2107 = vpop.f32.mrb[0].mxu0
        %v2108 = vpop.f32.mrb[0].mxu0
        %v2109 = vadd.f32 0.0, %v2108
        %v2110 = vpop.f32.mrb[0].mxu0
        %2111 = vmatprep.mubr.bf16.mxu0 %v1982
        %2112 = vmatmul.mubr.bf16.gmra.mrb[0].mxu0 %v1979
        %v2113 = vpop.f32.mrb[0].mxu0
        %v2114 = vadd.f32 0.0, %v2113
        %v2115 = vpop.f32.mrb[0].mxu0
        %v2116 = vpop.f32.mrb[0].mxu0
        %v2117 = vadd.f32 0.0, %v2116
        %v2118 = vpop.f32.mrb[0].mxu0
        %2119 = vmatprep.mubr.bf16.mxu0 %v1988
        %2120 = vmatmul.mubr.bf16.gmra.mrb[0].mxu0 %v1985
        %v2121 = vpop.f32.mrb[0].mxu0
        %v2122 = vadd.f32 0.0, %v2121
        %v2123 = vpop.f32.mrb[0].mxu0
        %v2124 = vpop.f32.mrb[0].mxu0
        %v2125 = vadd.f32 0.0, %v2124
        %v2126 = vpop.f32.mrb[0].mxu0
        %2127 = vmatprep.mubr.bf16.mxu0 %v1994
        %2128 = vmatmul.mubr.bf16.gmra.mrb[0].mxu0 %v1991
        %v2129 = vpop.f32.mrb[0].mxu0
        %v2130 = vadd.f32 0.0, %v2129
        %v2131 = vpop.f32.mrb[0].mxu0
        %v2132 = vpop.f32.mrb[0].mxu0
        %v2133 = vadd.f32 0.0, %v2132
        %v2134 = vpop.f32.mrb[0].mxu0
        %2135 = vmatprep.mubr.bf16.mxu0 %v2000
        %2136 = vmatmul.mubr.bf16.gmra.mrb[0].mxu0 %v1997
        %v2137 = vpop.f32.mrb[0].mxu0
        %v2138 = vadd.f32 0.0, %v2137
        %v2139 = vpop.f32.mrb[0].mxu0
        %v2140 = vpop.f32.mrb[0].mxu0
        %v2141 = vadd.f32 0.0, %v2140
        %v2142 = vpop.f32.mrb[0].mxu0
        %2143 = vmatprep.mubr.bf16.mxu0 %v2006
        %2144 = vmatmul.mubr.bf16.gmra.mrb[0].mxu0 %v2003
        %v2145 = vpop.f32.mrb[0].mxu0
        %v2146 = vadd.f32 0.0, %v2145
        %v2147 = vpop.f32.mrb[0].mxu0
        %v2148 = vpop.f32.mrb[0].mxu0
        %v2149 = vadd.f32 0.0, %v2148
        %v2150 = vpop.f32.mrb[0].mxu0
        %2151 = vmatprep.mubr.bf16.mxu0 %v2012
        %2152 = vmatmul.mubr.bf16.gmra.mrb[0].mxu0 %v2009
        %v2153 = vpop.f32.mrb[0].mxu0
        %v2154 = vadd.f32 0.0, %v2153
        %v2155 = vpop.f32.mrb[0].mxu0
        %v2156 = vpop.f32.mrb[0].mxu0
        %v2157 = vadd.f32 0.0, %v2156
        %v2158 = vpop.f32.mrb[0].mxu0
        %2159 = vmatprep.mubr.bf16.mxu0 %v2018
        %2160 = vmatmul.mubr.bf16.gmra.mrb[0].mxu0 %v2015
        %v2161 = vpop.f32.mrb[0].mxu0
        %v2162 = vadd.f32 0.0, %v2161
        %v2163 = vpop.f32.mrb[0].mxu0
        %v2164 = vpop.f32.mrb[0].mxu0
        %v2165 = vadd.f32 0.0, %v2164
        %v2166 = vpop.f32.mrb[0].mxu0
        %2167 = vmatprep.mubr.bf16.mxu0 %v2024
        %2168 = vmatmul.mubr.bf16.gmra.mrb[0].mxu0 %v2021
        %v2169 = vpop.f32.mrb[0].mxu0
        %v2170 = vadd.f32 0.0, %v2169
        %v2171 = vpop.f32.mrb[0].mxu0
        %v2172 = vpop.f32.mrb[0].mxu0
        %v2173 = vadd.f32 0.0, %v2172
        %v2174 = vpop.f32.mrb[0].mxu0
        %2175 = vmatprep.mubr.bf16.mxu0 %v2030
        %2176 = vmatmul.mubr.bf16.gmra.mrb[0].mxu0 %v2027
        %v2177 = vpop.f32.mrb[0].mxu0
        %v2178 = vadd.f32 0.0, %v2177
        %v2179 = vpop.f32.mrb[0].mxu0
        %v2180 = vpop.f32.mrb[0].mxu0
        %v2181 = vadd.f32 0.0, %v2180
        %v2182 = vpop.f32.mrb[0].mxu0
        %2183 = vmatprep.mubr.bf16.mxu0 %v2036
        %2184 = vmatmul.mubr.bf16.gmra.mrb[0].mxu0 %v2033
        %v2185 = vpop.f32.mrb[0].mxu0
        %v2186 = vadd.f32 0.0, %v2185
        %v2187 = vpop.f32.mrb[0].mxu0
        %v2188 = vpop.f32.mrb[0].mxu0
        %v2189 = vadd.f32 0.0, %v2188
        %v2190 = vpop.f32.mrb[0].mxu0
        %2191 = vmatprep.mubr.bf16.mxu0 %v2042
        %2192 = vmatmul.mubr.bf16.gmra.mrb[0].mxu0 %v2039
        %v2193 = vpop.f32.mrb[0].mxu0
        %v2194 = vadd.f32 0.0, %v2193
        %v2195 = vpop.f32.mrb[0].mxu0
        %v2196 = vpop.f32.mrb[0].mxu0
        %v2197 = vadd.f32 0.0, %v2196
        %v2198 = vpop.f32.mrb[0].mxu0
        %2199 = vmatprep.mubr.bf16.mxu0 %v2048
        %2200 = vmatmul.mubr.bf16.gmra.mrb[0].mxu0 %v2045
        %v2201 = vpop.f32.mrb[0].mxu0
        %v2202 = vadd.f32 0.0, %v2201
        %v2203 = vpop.f32.mrb[0].mxu0
        %v2204 = vpop.f32.mrb[0].mxu0
        %v2205 = vadd.f32 0.0, %v2204
        %v2206 = vpop.f32.mrb[0].mxu0
        %2207 = vmatprep.mubr.bf16.mxu0 %v2054
        %2208 = vmatmul.mubr.bf16.gmra.mrb[0].mxu0 %v2051
        %v2209 = vpop.f32.mrb[0].mxu0
        %v2210 = vadd.f32 0.0, %v2209
        %v2211 = vpop.f32.mrb[0].mxu0
        %v2212 = vpop.f32.mrb[0].mxu0
        %v2213 = vadd.f32 0.0, %v2212
        %v2214 = vpop.f32.mrb[0].mxu0
        %2215 = vdwg.mxu0
        %2216 = vmatprep.subr.bf16.mxu0 0
        %2217 = vmatpush1.bf16.msra.mxu0 %v1528
        %2218 = vmatprep.subr.bf16.mxu0 0
        %2219 = vmatpush1.bf16.msra.mxu0 %v1531
        %2220 = vmatprep.subr.bf16.mxu0 0
        %2221 = vmatpush1.bf16.msra.mxu0 %v1534
        %2222 = vmatprep.subr.bf16.mxu0 0
        %2223 = vmatpush1.bf16.msra.mxu0 %v1537
        %2224 = vmatprep.subr.bf16.mxu0 0
        %2225 = vmatpush1.bf16.msra.mxu0 %v1540
        %2226 = vmatprep.subr.bf16.mxu0 0
        %2227 = vmatpush1.bf16.msra.mxu0 %v1543
        %2228 = vmatprep.subr.bf16.mxu0 0
        %2229 = vmatpush1.bf16.msra.mxu0 %v1546
        %2230 = vmatprep.subr.bf16.mxu0 0
        %2231 = vmatpush1.bf16.msra.mxu0 %v1549
        %2232 = vmatprep.subr.bf16.mxu0 0
        %2233 = vmatpush1.bf16.msra.mxu0 %v1552
        %2234 = vmatprep.subr.bf16.mxu0 0
        %2235 = vmatpush1.bf16.msra.mxu0 %v1555
        %2236 = vmatprep.subr.bf16.mxu0 0
        %2237 = vmatpush1.bf16.msra.mxu0 %v1558
        %2238 = vmatprep.subr.bf16.mxu0 0
        %2239 = vmatpush1.bf16.msra.mxu0 %v1561
        %2240 = vmatprep.subr.bf16.mxu0 0
        %2241 = vmatpush1.bf16.msra.mxu0 %v1564
        %2242 = vmatprep.subr.bf16.mxu0 0
        %2243 = vmatpush1.bf16.msra.mxu0 %v1567
        %2244 = vmatprep.subr.bf16.mxu0 0
        %2245 = vmatpush1.bf16.msra.mxu0 %v1570
        %2246 = vmatprep.subr.bf16.mxu0 0
        %2247 = vmatpush1.bf16.msra.mxu0 %v1573
        %2248 = vmatprep.mubr.bf16.mxu0 %v1964
        %2249 = vmatmul.mubr.bf16.gmra.mrb[0].mxu0 %v1961
        %v2250 = vpop.f32.mrb[0].mxu0
        %v2251 = vadd.f32 0.0, %v2250
        %v2252 = vpop.f32.mrb[0].mxu0
        %v2253 = vpop.f32.mrb[0].mxu0
        %v2254 = vadd.f32 0.0, %v2253
        %v2255 = vpop.f32.mrb[0].mxu0
        %2256 = vmatprep.mubr.bf16.mxu0 %v1970
        %2257 = vmatmul.mubr.bf16.gmra.mrb[0].mxu0 %v1967
        %v2258 = vpop.f32.mrb[0].mxu0
        %v2259 = vadd.f32 0.0, %v2258
        %v2260 = vpop.f32.mrb[0].mxu0
        %v2261 = vpop.f32.mrb[0].mxu0
        %v2262 = vadd.f32 0.0, %v2261
        %v2263 = vpop.f32.mrb[0].mxu0
        %2264 = vmatprep.mubr.bf16.mxu0 %v1976
        %2265 = vmatmul.mubr.bf16.gmra.mrb[0].mxu0 %v1973
        %v2266 = vpop.f32.mrb[0].mxu0
        %v2267 = vadd.f32 0.0, %v2266
        %v2268 = vpop.f32.mrb[0].mxu0
        %v2269 = vpop.f32.mrb[0].mxu0
        %v2270 = vadd.f32 0.0, %v2269
        %v2271 = vpop.f32.mrb[0].mxu0
        %2272 = vmatprep.mubr.bf16.mxu0 %v1982
        %2273 = vmatmul.mubr.bf16.gmra.mrb[0].mxu0 %v1979
        %v2274 = vpop.f32.mrb[0].mxu0
        %v2275 = vadd.f32 0.0, %v2274
        %v2276 = vpop.f32.mrb[0].mxu0
        %v2277 = vpop.f32.mrb[0].mxu0
        %v2278 = vadd.f32 0.0, %v2277
        %v2279 = vpop.f32.mrb[0].mxu0
        %2280 = vmatprep.mubr.bf16.mxu0 %v1988
        %2281 = vmatmul.mubr.bf16.gmra.mrb[0].mxu0 %v1985
        %v2282 = vpop.f32.mrb[0].mxu0
        %v2283 = vadd.f32 0.0, %v2282
        %v2284 = vpop.f32.mrb[0].mxu0
        %v2285 = vpop.f32.mrb[0].mxu0
        %v2286 = vadd.f32 0.0, %v2285
        %v2287 = vpop.f32.mrb[0].mxu0
        %2288 = vmatprep.mubr.bf16.mxu0 %v1994
        %2289 = vmatmul.mubr.bf16.gmra.mrb[0].mxu0 %v1991
        %v2290 = vpop.f32.mrb[0].mxu0
        %v2291 = vadd.f32 0.0, %v2290
        %v2292 = vpop.f32.mrb[0].mxu0
        %v2293 = vpop.f32.mrb[0].mxu0
        %v2294 = vadd.f32 0.0, %v2293
        %v2295 = vpop.f32.mrb[0].mxu0
        %2296 = vmatprep.mubr.bf16.mxu0 %v2000
        %2297 = vmatmul.mubr.bf16.gmra.mrb[0].mxu0 %v1997
        %v2298 = vpop.f32.mrb[0].mxu0
        %v2299 = vadd.f32 0.0, %v2298
        %v2300 = vpop.f32.mrb[0].mxu0
        %v2301 = vpop.f32.mrb[0].mxu0
        %v2302 = vadd.f32 0.0, %v2301
        %v2303 = vpop.f32.mrb[0].mxu0
        %2304 = vmatprep.mubr.bf16.mxu0 %v2006
        %2305 = vmatmul.mubr.bf16.gmra.mrb[0].mxu0 %v2003
        %v2306 = vpop.f32.mrb[0].mxu0
        %v2307 = vadd.f32 0.0, %v2306
        %v2308 = vpop.f32.mrb[0].mxu0
        %v2309 = vpop.f32.mrb[0].mxu0
        %v2310 = vadd.f32 0.0, %v2309
        %v2311 = vpop.f32.mrb[0].mxu0
        %2312 = vmatprep.mubr.bf16.mxu0 %v2012
        %2313 = vmatmul.mubr.bf16.gmra.mrb[0].mxu0 %v2009
        %v2314 = vpop.f32.mrb[0].mxu0
        %v2315 = vadd.f32 0.0, %v2314
        %v2316 = vpop.f32.mrb[0].mxu0
        %v2317 = vpop.f32.mrb[0].mxu0
        %v2318 = vadd.f32 0.0, %v2317
        %v2319 = vpop.f32.mrb[0].mxu0
        %2320 = vmatprep.mubr.bf16.mxu0 %v2018
        %2321 = vmatmul.mubr.bf16.gmra.mrb[0].mxu0 %v2015
        %v2322 = vpop.f32.mrb[0].mxu0
        %v2323 = vadd.f32 0.0, %v2322
        %v2324 = vpop.f32.mrb[0].mxu0
        %v2325 = vpop.f32.mrb[0].mxu0
        %v2326 = vadd.f32 0.0, %v2325
        %v2327 = vpop.f32.mrb[0].mxu0
        %2328 = vmatprep.mubr.bf16.mxu0 %v2024
        %2329 = vmatmul.mubr.bf16.gmra.mrb[0].mxu0 %v2021
        %v2330 = vpop.f32.mrb[0].mxu0
        %v2331 = vadd.f32 0.0, %v2330
        %v2332 = vpop.f32.mrb[0].mxu0
        %v2333 = vpop.f32.mrb[0].mxu0
        %v2334 = vadd.f32 0.0, %v2333
        %v2335 = vpop.f32.mrb[0].mxu0
        %2336 = vmatprep.mubr.bf16.mxu0 %v2030
        %2337 = vmatmul.mubr.bf16.gmra.mrb[0].mxu0 %v2027
        %v2338 = vpop.f32.mrb[0].mxu0
        %v2339 = vadd.f32 0.0, %v2338
        %v2340 = vpop.f32.mrb[0].mxu0
        %v2341 = vpop.f32.mrb[0].mxu0
        %v2342 = vadd.f32 0.0, %v2341
        %v2343 = vpop.f32.mrb[0].mxu0
        %2344 = vmatprep.mubr.bf16.mxu0 %v2036
        %2345 = vmatmul.mubr.bf16.gmra.mrb[0].mxu0 %v2033
        %v2346 = vpop.f32.mrb[0].mxu0
        %v2347 = vadd.f32 0.0, %v2346
        %v2348 = vpop.f32.mrb[0].mxu0
        %v2349 = vpop.f32.mrb[0].mxu0
        %v2350 = vadd.f32 0.0, %v2349
        %v2351 = vpop.f32.mrb[0].mxu0
        %2352 = vmatprep.mubr.bf16.mxu0 %v2042
        %2353 = vmatmul.mubr.bf16.gmra.mrb[0].mxu0 %v2039
        %v2354 = vpop.f32.mrb[0].mxu0
        %v2355 = vadd.f32 0.0, %v2354
        %v2356 = vpop.f32.mrb[0].mxu0
        %v2357 = vpop.f32.mrb[0].mxu0
        %v2358 = vadd.f32 0.0, %v2357
        %v2359 = vpop.f32.mrb[0].mxu0
        %2360 = vmatprep.mubr.bf16.mxu0 %v2048
        %2361 = vmatmul.mubr.bf16.gmra.mrb[0].mxu0 %v2045
        %v2362 = vpop.f32.mrb[0].mxu0
        %v2363 = vadd.f32 0.0, %v2362
        %v2364 = vpop.f32.mrb[0].mxu0
        %v2365 = vpop.f32.mrb[0].mxu0
        %v2366 = vadd.f32 0.0, %v2365
        %v2367 = vpop.f32.mrb[0].mxu0
        %2368 = vmatprep.mubr.bf16.mxu0 %v2054
        %2369 = vmatmul.mubr.bf16.gmra.mrb[0].mxu0 %v2051
        %v2370 = vpop.f32.mrb[0].mxu0
        %v2371 = vadd.f32 0.0, %v2370
        %v2372 = vpop.f32.mrb[0].mxu0
        %v2373 = vpop.f32.mrb[0].mxu0
        %v2374 = vadd.f32 0.0, %v2373
        %v2375 = vpop.f32.mrb[0].mxu0
        %2376 = vdwg.mxu0
        %v2377 = vrcp.pop %v2090
        %v2378 = vrcp.pop %v2093
        %v2379 = vrcp.pop %v2098
        %v2380 = vrcp.pop %v2101
        %v2381 = vrcp.pop %v2106
        %v2382 = vrcp.pop %v2109
        %v2383 = vrcp.pop %v2114
        %v2384 = vrcp.pop %v2117
        %v2385 = vrcp.pop %v2122
        %v2386 = vrcp.pop %v2125
        %v2387 = vrcp.pop %v2130
        %v2388 = vrcp.pop %v2133
        %v2389 = vrcp.pop %v2138
        %v2390 = vrcp.pop %v2141
        %v2391 = vrcp.pop %v2146
        %v2392 = vrcp.pop %v2149
        %v2393 = vrcp.pop %v2154
        %v2394 = vrcp.pop %v2157
        %v2395 = vrcp.pop %v2162
        %v2396 = vrcp.pop %v2165
        %v2397 = vrcp.pop %v2170
        %v2398 = vrcp.pop %v2173
        %v2399 = vrcp.pop %v2178
        %v2400 = vrcp.pop %v2181
        %v2401 = vrcp.pop %v2186
        %v2402 = vrcp.pop %v2189
        %v2403 = vrcp.pop %v2194
        %v2404 = vrcp.pop %v2197
        %v2405 = vrcp.pop %v2202
        %v2406 = vrcp.pop %v2205
        %v2407 = vrcp.pop %v2210
        %v2408 = vrcp.pop %v2213
        %2410 = vset.pattern.permute.xlu0 0
        %2411 = vperm.xlu0 %2410, %v2377
        %v2412 = vpop.permute.xlu0 %2411
        %2415 = vset.pattern.permute.xlu0 0
        %2416 = vperm.xlu0 %2415, %v2378
        %v2417 = vpop.permute.xlu0 %2416
        %2420 = vset.pattern.permute.xlu0 0
        %2421 = vperm.xlu0 %2420, %v2379
        %v2422 = vpop.permute.xlu0 %2421
        %2425 = vset.pattern.permute.xlu0 0
        %2426 = vperm.xlu0 %2425, %v2380
        %v2427 = vpop.permute.xlu0 %2426
        %2430 = vset.pattern.permute.xlu0 0
        %2431 = vperm.xlu0 %2430, %v2381
        %v2432 = vpop.permute.xlu0 %2431
        %2435 = vset.pattern.permute.xlu0 0
        %2436 = vperm.xlu0 %2435, %v2382
        %v2437 = vpop.permute.xlu0 %2436
        %2440 = vset.pattern.permute.xlu0 0
        %2441 = vperm.xlu0 %2440, %v2383
        %v2442 = vpop.permute.xlu0 %2441
        %2445 = vset.pattern.permute.xlu0 0
        %2446 = vperm.xlu0 %2445, %v2384
        %v2447 = vpop.permute.xlu0 %2446
        %2450 = vset.pattern.permute.xlu0 0
        %2451 = vperm.xlu0 %2450, %v2385
        %v2452 = vpop.permute.xlu0 %2451
        %2455 = vset.pattern.permute.xlu0 0
        %2456 = vperm.xlu0 %2455, %v2386
        %v2457 = vpop.permute.xlu0 %2456
        %2460 = vset.pattern.permute.xlu0 0
        %2461 = vperm.xlu0 %2460, %v2387
        %v2462 = vpop.permute.xlu0 %2461
        %2465 = vset.pattern.permute.xlu0 0
        %2466 = vperm.xlu0 %2465, %v2388
        %v2467 = vpop.permute.xlu0 %2466
        %2470 = vset.pattern.permute.xlu0 0
        %2471 = vperm.xlu0 %2470, %v2389
        %v2472 = vpop.permute.xlu0 %2471
        %2475 = vset.pattern.permute.xlu0 0
        %2476 = vperm.xlu0 %2475, %v2390
        %v2477 = vpop.permute.xlu0 %2476
        %2480 = vset.pattern.permute.xlu0 0
        %2481 = vperm.xlu0 %2480, %v2391
        %v2482 = vpop.permute.xlu0 %2481
        %2485 = vset.pattern.permute.xlu0 0
        %2486 = vperm.xlu0 %2485, %v2392
        %v2487 = vpop.permute.xlu0 %2486
        %2490 = vset.pattern.permute.xlu0 0
        %2491 = vperm.xlu0 %2490, %v2393
        %v2492 = vpop.permute.xlu0 %2491
        %2495 = vset.pattern.permute.xlu0 0
        %2496 = vperm.xlu0 %2495, %v2394
        %v2497 = vpop.permute.xlu0 %2496
        %2500 = vset.pattern.permute.xlu0 0
        %2501 = vperm.xlu0 %2500, %v2395
        %v2502 = vpop.permute.xlu0 %2501
        %2505 = vset.pattern.permute.xlu0 0
        %2506 = vperm.xlu0 %2505, %v2396
        %v2507 = vpop.permute.xlu0 %2506
        %2510 = vset.pattern.permute.xlu0 0
        %2511 = vperm.xlu0 %2510, %v2397
        %v2512 = vpop.permute.xlu0 %2511
        %2515 = vset.pattern.permute.xlu0 0
        %2516 = vperm.xlu0 %2515, %v2398
        %v2517 = vpop.permute.xlu0 %2516
        %2520 = vset.pattern.permute.xlu0 0
        %2521 = vperm.xlu0 %2520, %v2399
        %v2522 = vpop.permute.xlu0 %2521
        %2525 = vset.pattern.permute.xlu0 0
        %2526 = vperm.xlu0 %2525, %v2400
        %v2527 = vpop.permute.xlu0 %2526
        %2530 = vset.pattern.permute.xlu0 0
        %2531 = vperm.xlu0 %2530, %v2401
        %v2532 = vpop.permute.xlu0 %2531
        %2535 = vset.pattern.permute.xlu0 0
        %2536 = vperm.xlu0 %2535, %v2402
        %v2537 = vpop.permute.xlu0 %2536
        %2540 = vset.pattern.permute.xlu0 0
        %2541 = vperm.xlu0 %2540, %v2403
        %v2542 = vpop.permute.xlu0 %2541
        %2545 = vset.pattern.permute.xlu0 0
        %2546 = vperm.xlu0 %2545, %v2404
        %v2547 = vpop.permute.xlu0 %2546
        %2550 = vset.pattern.permute.xlu0 0
        %2551 = vperm.xlu0 %2550, %v2405
        %v2552 = vpop.permute.xlu0 %2551
        %2555 = vset.pattern.permute.xlu0 0
        %2556 = vperm.xlu0 %2555, %v2406
        %v2557 = vpop.permute.xlu0 %2556
        %2560 = vset.pattern.permute.xlu0 0
        %2561 = vperm.xlu0 %2560, %v2407
        %v2562 = vpop.permute.xlu0 %2561
        %2565 = vset.pattern.permute.xlu0 0
        %2566 = vperm.xlu0 %2565, %v2408
        %v2567 = vpop.permute.xlu0 %2566
        %v2569 = vmul.f32 %v2251, %v2412
        %v2570 = vmul.f32 %v2254, %v2417
        %v2571 = vmul.f32 %v2259, %v2422
        %v2572 = vmul.f32 %v2262, %v2427
        %v2573 = vmul.f32 %v2267, %v2432
        %v2574 = vmul.f32 %v2270, %v2437
        %v2575 = vmul.f32 %v2275, %v2442
        %v2576 = vmul.f32 %v2278, %v2447
        %v2577 = vmul.f32 %v2283, %v2452
        %v2578 = vmul.f32 %v2286, %v2457
        %v2579 = vmul.f32 %v2291, %v2462
        %v2580 = vmul.f32 %v2294, %v2467
        %v2581 = vmul.f32 %v2299, %v2472
        %v2582 = vmul.f32 %v2302, %v2477
        %v2583 = vmul.f32 %v2307, %v2482
        %v2584 = vmul.f32 %v2310, %v2487
        %v2585 = vmul.f32 %v2315, %v2492
        %v2586 = vmul.f32 %v2318, %v2497
        %v2587 = vmul.f32 %v2323, %v2502
        %v2588 = vmul.f32 %v2326, %v2507
        %v2589 = vmul.f32 %v2331, %v2512
        %v2590 = vmul.f32 %v2334, %v2517
        %v2591 = vmul.f32 %v2339, %v2522
        %v2592 = vmul.f32 %v2342, %v2527
        %v2593 = vmul.f32 %v2347, %v2532
        %v2594 = vmul.f32 %v2350, %v2537
        %v2595 = vmul.f32 %v2355, %v2542
        %v2596 = vmul.f32 %v2358, %v2547
        %v2597 = vmul.f32 %v2363, %v2552
        %v2598 = vmul.f32 %v2366, %v2557
        %v2599 = vmul.f32 %v2371, %v2562
        %v2600 = vmul.f32 %v2374, %v2567
        %v2601 = vpack.c.bf16 %v2570, %v2569
        %v2602 = vpack.c.bf16 %v2572, %v2571
        %v2603 = vpack.c.bf16 %v2574, %v2573
        %v2604 = vpack.c.bf16 %v2576, %v2575
        %v2605 = vpack.c.bf16 %v2578, %v2577
        %v2606 = vpack.c.bf16 %v2580, %v2579
        %v2607 = vpack.c.bf16 %v2582, %v2581
        %v2608 = vpack.c.bf16 %v2584, %v2583
        %v2609 = vpack.c.bf16 %v2586, %v2585
        %v2610 = vpack.c.bf16 %v2588, %v2587
        %v2611 = vpack.c.bf16 %v2590, %v2589
        %v2612 = vpack.c.bf16 %v2592, %v2591
        %v2613 = vpack.c.bf16 %v2594, %v2593
        %v2614 = vpack.c.bf16 %v2596, %v2595
        %v2615 = vpack.c.bf16 %v2598, %v2597
        %v2616 = vpack.c.bf16 %v2600, %v2599
        %v2617 = vld [vmem:[%s6] sm:$0xf]
        %v2618 = vld [vmem:[%s6 + $0x4] sm:$0xf]
        %v2619 = vld [vmem:[%s6 + $0x8] sm:$0xf]
        %v2620 = vld [vmem:[%s6 + $0xc] sm:$0xf]
        %v2621 = vld [vmem:[%s6 + $0x10] sm:$0xf]
        %v2622 = vld [vmem:[%s6 + $0x14] sm:$0xf]
        %v2623 = vld [vmem:[%s6 + $0x18] sm:$0xf]
        %v2624 = vld [vmem:[%s6 + $0x1c] sm:$0xf]
        %v2625 = vld [vmem:[%s6 + $0x20] sm:$0xf]
        %v2626 = vld [vmem:[%s6 + $0x24] sm:$0xf]
        %v2627 = vld [vmem:[%s6 + $0x28] sm:$0xf]
        %v2628 = vld [vmem:[%s6 + $0x2c] sm:$0xf]
        %v2629 = vld [vmem:[%s6 + $0x30] sm:$0xf]
        %v2630 = vld [vmem:[%s6 + $0x34] sm:$0xf]
        %v2631 = vld [vmem:[%s6 + $0x38] sm:$0xf]
        %v2632 = vld [vmem:[%s6 + $0x3c] sm:$0xf]
        %v2633 = vld [vmem:[%s7] sm:$0x1]
        %v2635 = vlaneseq
        %v2636 = vshrl.u32 %v2635, 7
        %v2637 = vsub.s32 0, %v2636
        %v2638 = vrot.slane %v2633, %v2637
        %v2656 = vunpack.c.l.b16 %v2617
        %v2657 = vunpack.c.l.b16 %v2618
        %v2658 = vunpack.c.l.b16 %v2619
        %v2659 = vunpack.c.l.b16 %v2620
        %v2660 = vunpack.c.l.b16 %v2621
        %v2661 = vunpack.c.l.b16 %v2622
        %v2662 = vunpack.c.l.b16 %v2623
        %v2663 = vunpack.c.l.b16 %v2624
        %v2664 = vunpack.c.l.b16 %v2625
        %v2665 = vunpack.c.l.b16 %v2626
        %v2666 = vunpack.c.l.b16 %v2627
        %v2667 = vunpack.c.l.b16 %v2628
        %v2668 = vunpack.c.l.b16 %v2629
        %v2669 = vunpack.c.l.b16 %v2630
        %v2670 = vunpack.c.l.b16 %v2631
        %v2671 = vunpack.c.l.b16 %v2632
        %v2672 = vpack.c.b16 %v2657, %v2656
        %v2673 = vpack.c.b16 %v2659, %v2658
        %v2674 = vpack.c.b16 %v2661, %v2660
        %v2675 = vpack.c.b16 %v2663, %v2662
        %v2676 = vpack.c.b16 %v2665, %v2664
        %v2677 = vpack.c.b16 %v2667, %v2666
        %v2678 = vpack.c.b16 %v2669, %v2668
        %v2679 = vpack.c.b16 %v2671, %v2670
        %2688 = vmatprep.subr.bf16.mxu0 0
        %2689 = vmatpush1.bf16.msra.mxu0 %v2672
        %2690 = vmatprep.subr.bf16.mxu0 0
        %2691 = vmatpush1.bf16.msra.mxu0 %v2673
        %2692 = vmatprep.subr.bf16.mxu0 0
        %2693 = vmatpush1.bf16.msra.mxu0 %v2674
        %2694 = vmatprep.subr.bf16.mxu0 0
        %2695 = vmatpush1.bf16.msra.mxu0 %v2675
        %2696 = vmatprep.subr.bf16.mxu0 0
        %2697 = vmatpush1.bf16.msra.mxu0 %v2676
        %2698 = vmatprep.subr.bf16.mxu0 0
        %2699 = vmatpush1.bf16.msra.mxu0 %v2677
        %2700 = vmatprep.subr.bf16.mxu0 0
        %2701 = vmatpush1.bf16.msra.mxu0 %v2678
        %2702 = vmatprep.subr.bf16.mxu0 0
        %2703 = vmatpush1.bf16.msra.mxu0 %v2679
        %2704 = vmatprep.subr.bf16.mxu0 0
        %2705 = vmatpush1.bf16.msra.mxu0 0
        %2706 = vmatprep.subr.bf16.mxu0 0
        %2707 = vmatpush1.bf16.msra.mxu0 0
        %2708 = vmatprep.subr.bf16.mxu0 0
        %2709 = vmatpush1.bf16.msra.mxu0 0
        %2710 = vmatprep.subr.bf16.mxu0 0
        %2711 = vmatpush1.bf16.msra.mxu0 0
        %2712 = vmatprep.subr.bf16.mxu0 0
        %2713 = vmatpush1.bf16.msra.mxu0 0
        %2714 = vmatprep.subr.bf16.mxu0 0
        %2715 = vmatpush1.bf16.msra.mxu0 0
        %2716 = vmatprep.subr.bf16.mxu0 0
        %2717 = vmatpush1.bf16.msra.mxu0 0
        %2718 = vmatprep.subr.bf16.mxu0 0
        %2719 = vmatpush1.bf16.msra.mxu0 0
        %2720 = vmatprep.mubr.bf16.mxu0 0
        %2721 = vmatmul.mubr.bf16.gmra.mrb[0].mxu0 %v2601
        %v2722 = vpop.f32.mrb[0].mxu0
        %v2723 = vadd.f32 %v2638, %v2722
        %v2724 = vpop.f32.mrb[0].mxu0
        %v2725 = vpop.f32.mrb[0].mxu0
        %v2726 = vadd.f32 %v2638, %v2725
        %v2727 = vpop.f32.mrb[0].mxu0
        %2728 = vmatprep.mubr.bf16.mxu0 0
        %2729 = vmatmul.mubr.bf16.gmra.mrb[0].mxu0 %v2602
        %v2730 = vpop.f32.mrb[0].mxu0
        %v2731 = vadd.f32 %v2638, %v2730
        %v2732 = vpop.f32.mrb[0].mxu0
        %v2733 = vpop.f32.mrb[0].mxu0
        %v2734 = vadd.f32 %v2638, %v2733
        %v2735 = vpop.f32.mrb[0].mxu0
        %2736 = vmatprep.mubr.bf16.mxu0 0
        %2737 = vmatmul.mubr.bf16.gmra.mrb[0].mxu0 %v2603
        %v2738 = vpop.f32.mrb[0].mxu0
        %v2739 = vadd.f32 %v2638, %v2738
        %v2740 = vpop.f32.mrb[0].mxu0
        %v2741 = vpop.f32.mrb[0].mxu0
        %v2742 = vadd.f32 %v2638, %v2741
        %v2743 = vpop.f32.mrb[0].mxu0
        %2744 = vmatprep.mubr.bf16.mxu0 0
        %2745 = vmatmul.mubr.bf16.gmra.mrb[0].mxu0 %v2604
        %v2746 = vpop.f32.mrb[0].mxu0
        %v2747 = vadd.f32 %v2638, %v2746
        %v2748 = vpop.f32.mrb[0].mxu0
        %v2749 = vpop.f32.mrb[0].mxu0
        %v2750 = vadd.f32 %v2638, %v2749
        %v2751 = vpop.f32.mrb[0].mxu0
        %2752 = vmatprep.mubr.bf16.mxu0 0
        %2753 = vmatmul.mubr.bf16.gmra.mrb[0].mxu0 %v2605
        %v2754 = vpop.f32.mrb[0].mxu0
        %v2755 = vadd.f32 %v2638, %v2754
        %v2756 = vpop.f32.mrb[0].mxu0
        %v2757 = vpop.f32.mrb[0].mxu0
        %v2758 = vadd.f32 %v2638, %v2757
        %v2759 = vpop.f32.mrb[0].mxu0
        %2760 = vmatprep.mubr.bf16.mxu0 0
        %2761 = vmatmul.mubr.bf16.gmra.mrb[0].mxu0 %v2606
        %v2762 = vpop.f32.mrb[0].mxu0
        %v2763 = vadd.f32 %v2638, %v2762
        %v2764 = vpop.f32.mrb[0].mxu0
        %v2765 = vpop.f32.mrb[0].mxu0
        %v2766 = vadd.f32 %v2638, %v2765
        %v2767 = vpop.f32.mrb[0].mxu0
        %2768 = vmatprep.mubr.bf16.mxu0 0
        %2769 = vmatmul.mubr.bf16.gmra.mrb[0].mxu0 %v2607
        %v2770 = vpop.f32.mrb[0].mxu0
        %v2771 = vadd.f32 %v2638, %v2770
        %v2772 = vpop.f32.mrb[0].mxu0
        %v2773 = vpop.f32.mrb[0].mxu0
        %v2774 = vadd.f32 %v2638, %v2773
        %v2775 = vpop.f32.mrb[0].mxu0
        %2776 = vmatprep.mubr.bf16.mxu0 0
        %2777 = vmatmul.mubr.bf16.gmra.mrb[0].mxu0 %v2608
        %v2778 = vpop.f32.mrb[0].mxu0
        %v2779 = vadd.f32 %v2638, %v2778
        %v2780 = vpop.f32.mrb[0].mxu0
        %v2781 = vpop.f32.mrb[0].mxu0
        %v2782 = vadd.f32 %v2638, %v2781
        %v2783 = vpop.f32.mrb[0].mxu0
        %2784 = vmatprep.mubr.bf16.mxu0 0
        %2785 = vmatmul.mubr.bf16.gmra.mrb[0].mxu0 %v2609
        %v2786 = vpop.f32.mrb[0].mxu0
        %v2787 = vadd.f32 %v2638, %v2786
        %v2788 = vpop.f32.mrb[0].mxu0
        %v2789 = vpop.f32.mrb[0].mxu0
        %v2790 = vadd.f32 %v2638, %v2789
        %v2791 = vpop.f32.mrb[0].mxu0
        %2792 = vmatprep.mubr.bf16.mxu0 0
        %2793 = vmatmul.mubr.bf16.gmra.mrb[0].mxu0 %v2610
        %v2794 = vpop.f32.mrb[0].mxu0
        %v2795 = vadd.f32 %v2638, %v2794
        %v2796 = vpop.f32.mrb[0].mxu0
        %v2797 = vpop.f32.mrb[0].mxu0
        %v2798 = vadd.f32 %v2638, %v2797
        %v2799 = vpop.f32.mrb[0].mxu0
        %2800 = vmatprep.mubr.bf16.mxu0 0
        %2801 = vmatmul.mubr.bf16.gmra.mrb[0].mxu0 %v2611
        %v2802 = vpop.f32.mrb[0].mxu0
        %v2803 = vadd.f32 %v2638, %v2802
        %v2804 = vpop.f32.mrb[0].mxu0
        %v2805 = vpop.f32.mrb[0].mxu0
        %v2806 = vadd.f32 %v2638, %v2805
        %v2807 = vpop.f32.mrb[0].mxu0
        %2808 = vmatprep.mubr.bf16.mxu0 0
        %2809 = vmatmul.mubr.bf16.gmra.mrb[0].mxu0 %v2612
        %v2810 = vpop.f32.mrb[0].mxu0
        %v2811 = vadd.f32 %v2638, %v2810
        %v2812 = vpop.f32.mrb[0].mxu0
        %v2813 = vpop.f32.mrb[0].mxu0
        %v2814 = vadd.f32 %v2638, %v2813
        %v2815 = vpop.f32.mrb[0].mxu0
        %2816 = vmatprep.mubr.bf16.mxu0 0
        %2817 = vmatmul.mubr.bf16.gmra.mrb[0].mxu0 %v2613
        %v2818 = vpop.f32.mrb[0].mxu0
        %v2819 = vadd.f32 %v2638, %v2818
        %v2820 = vpop.f32.mrb[0].mxu0
        %v2821 = vpop.f32.mrb[0].mxu0
        %v2822 = vadd.f32 %v2638, %v2821
        %v2823 = vpop.f32.mrb[0].mxu0
        %2824 = vmatprep.mubr.bf16.mxu0 0
        %2825 = vmatmul.mubr.bf16.gmra.mrb[0].mxu0 %v2614
        %v2826 = vpop.f32.mrb[0].mxu0
        %v2827 = vadd.f32 %v2638, %v2826
        %v2828 = vpop.f32.mrb[0].mxu0
        %v2829 = vpop.f32.mrb[0].mxu0
        %v2830 = vadd.f32 %v2638, %v2829
        %v2831 = vpop.f32.mrb[0].mxu0
        %2832 = vmatprep.mubr.bf16.mxu0 0
        %2833 = vmatmul.mubr.bf16.gmra.mrb[0].mxu0 %v2615
        %v2834 = vpop.f32.mrb[0].mxu0
        %v2835 = vadd.f32 %v2638, %v2834
        %v2836 = vpop.f32.mrb[0].mxu0
        %v2837 = vpop.f32.mrb[0].mxu0
        %v2838 = vadd.f32 %v2638, %v2837
        %v2839 = vpop.f32.mrb[0].mxu0
        %2840 = vmatprep.mubr.bf16.mxu0 0
        %2841 = vmatmul.mubr.bf16.gmra.mrb[0].mxu0 %v2616
        %v2842 = vpop.f32.mrb[0].mxu0
        %v2843 = vadd.f32 %v2638, %v2842
        %v2844 = vpop.f32.mrb[0].mxu0
        %v2845 = vpop.f32.mrb[0].mxu0
        %v2846 = vadd.f32 %v2638, %v2845
        %v2847 = vpop.f32.mrb[0].mxu0
        %2848 = vdwg.mxu0
        %2849 = vxpose.xlu0.b32.start [1/16] %v2723, 128
        %2850 = vxpose.xlu0.b32.cont [2/16] %v2726, 128
        %2851 = vxpose.xlu0.b32.cont [3/16] %v2731, 128
        %2852 = vxpose.xlu0.b32.cont [4/16] %v2734, 128
        %2853 = vxpose.xlu0.b32.cont [5/16] %v2739, 128
        %2854 = vxpose.xlu0.b32.cont [6/16] %v2742, 128
        %2855 = vxpose.xlu0.b32.cont [7/16] %v2747, 128
        %2856 = vxpose.xlu0.b32.cont [8/16] %v2750, 128
        %2857 = vxpose.xlu0.b32.cont [9/16] %v2755, 128
        %2858 = vxpose.xlu0.b32.cont [10/16] %v2758, 128
        %2859 = vxpose.xlu0.b32.cont [11/16] %v2763, 128
        %2860 = vxpose.xlu0.b32.cont [12/16] %v2766, 128
        %2861 = vxpose.xlu0.b32.cont [13/16] %v2771, 128
        %2862 = vxpose.xlu0.b32.cont [14/16] %v2774, 128
        %2863 = vxpose.xlu0.b32.cont [15/16] %v2779, 128
        %2864 = vxpose.xlu0.b32.end [16/16] %v2782, 128
        %v2865 = vpop.trf.xlu0
        %v2866 = vpop.trf.xlu0
        %v2867 = vpop.trf.xlu0
        %v2868 = vpop.trf.xlu0
        %v2869 = vpop.trf.xlu0
        %v2870 = vpop.trf.xlu0
        %v2871 = vpop.trf.xlu0
        %v2872 = vpop.trf.xlu0
        %v2873 = vpop.trf.xlu0
        %v2874 = vpop.trf.xlu0
        %v2875 = vpop.trf.xlu0
        %v2876 = vpop.trf.xlu0
        %v2877 = vpop.trf.xlu0
        %v2878 = vpop.trf.xlu0
        %v2879 = vpop.trf.xlu0
        %v2880 = vpop.trf.xlu0
        %2881 = vxpose.xlu0.b32.start [1/16] %v2787, 128
        %2882 = vxpose.xlu0.b32.cont [2/16] %v2790, 128
        %2883 = vxpose.xlu0.b32.cont [3/16] %v2795, 128
        %2884 = vxpose.xlu0.b32.cont [4/16] %v2798, 128
        %2885 = vxpose.xlu0.b32.cont [5/16] %v2803, 128
        %2886 = vxpose.xlu0.b32.cont [6/16] %v2806, 128
        %2887 = vxpose.xlu0.b32.cont [7/16] %v2811, 128
        %2888 = vxpose.xlu0.b32.cont [8/16] %v2814, 128
        %2889 = vxpose.xlu0.b32.cont [9/16] %v2819, 128
        %2890 = vxpose.xlu0.b32.cont [10/16] %v2822, 128
        %2891 = vxpose.xlu0.b32.cont [11/16] %v2827, 128
        %2892 = vxpose.xlu0.b32.cont [12/16] %v2830, 128
        %2893 = vxpose.xlu0.b32.cont [13/16] %v2835, 128
        %2894 = vxpose.xlu0.b32.cont [14/16] %v2838, 128
        %2895 = vxpose.xlu0.b32.cont [15/16] %v2843, 128
        %2896 = vxpose.xlu0.b32.end [16/16] %v2846, 128
        %v2897 = vpop.trf.xlu0
        %v2898 = vpop.trf.xlu0
        %v2899 = vpop.trf.xlu0
        %v2900 = vpop.trf.xlu0
        %v2901 = vpop.trf.xlu0
        %v2902 = vpop.trf.xlu0
        %v2903 = vpop.trf.xlu0
        %v2904 = vpop.trf.xlu0
        %v2905 = vpop.trf.xlu0
        %v2906 = vpop.trf.xlu0
        %v2907 = vpop.trf.xlu0
        %v2908 = vpop.trf.xlu0
        %v2909 = vpop.trf.xlu0
        %v2910 = vpop.trf.xlu0
        %v2911 = vpop.trf.xlu0
        %v2912 = vpop.trf.xlu0
        %v2913 = vadd.f32 %v341, %v2865
        %v2914 = vadd.f32 %v342, %v2897
        %v2915 = vadd.f32 %v343, %v2866
        %v2916 = vadd.f32 %v344, %v2898
        %v2917 = vadd.f32 %v345, %v2867
        %v2918 = vadd.f32 %v346, %v2899
        %v2919 = vadd.f32 %v347, %v2868
        %v2920 = vadd.f32 %v348, %v2900
        %v2921 = vadd.f32 %v349, %v2869
        %v2922 = vadd.f32 %v350, %v2901
        %v2923 = vadd.f32 %v351, %v2870
        %v2924 = vadd.f32 %v352, %v2902
        %v2925 = vadd.f32 %v353, %v2871
        %v2926 = vadd.f32 %v354, %v2903
        %v2927 = vadd.f32 %v355, %v2872
        %v2928 = vadd.f32 %v356, %v2904
        %v2929 = vadd.f32 %v357, %v2873
        %v2930 = vadd.f32 %v358, %v2905
        %v2931 = vadd.f32 %v359, %v2874
        %v2932 = vadd.f32 %v360, %v2906
        %v2933 = vadd.f32 %v361, %v2875
        %v2934 = vadd.f32 %v362, %v2907
        %v2935 = vadd.f32 %v363, %v2876
        %v2936 = vadd.f32 %v364, %v2908
        %v2937 = vadd.f32 %v365, %v2877
        %v2938 = vadd.f32 %v366, %v2909
        %v2939 = vadd.f32 %v367, %v2878
        %v2940 = vadd.f32 %v368, %v2910
        %v2941 = vadd.f32 %v369, %v2879
        %v2942 = vadd.f32 %v370, %v2911
        %v2943 = vadd.f32 %v371, %v2880
        %v2944 = vadd.f32 %v372, %v2912
        %2945 = vst [vmem:[%s338] sm:$0xff] %v2913
        %2946 = vst [vmem:[%s338 + $0x8] sm:$0xff] %v2914
        %2947 = vst [vmem:[%s338 + $0x10] sm:$0xff] %v2915
        %2948 = vst [vmem:[%s338 + $0x18] sm:$0xff] %v2916
        %2949 = vst [vmem:[%s338 + $0x20] sm:$0xff] %v2917
        %2950 = vst [vmem:[%s338 + $0x28] sm:$0xff] %v2918
        %2951 = vst [vmem:[%s338 + $0x30] sm:$0xff] %v2919
        %2952 = vst [vmem:[%s338 + $0x38] sm:$0xff] %v2920
        %2953 = vst [vmem:[%s338 + $0x40] sm:$0xff] %v2921
        %2954 = vst [vmem:[%s338 + $0x48] sm:$0xff] %v2922
        %2955 = vst [vmem:[%s338 + $0x50] sm:$0xff] %v2923
        %2956 = vst [vmem:[%s338 + $0x58] sm:$0xff] %v2924
        %2957 = vst [vmem:[%s338 + $0x60] sm:$0xff] %v2925
        %2958 = vst [vmem:[%s338 + $0x68] sm:$0xff] %v2926
        %2959 = vst [vmem:[%s338 + $0x70] sm:$0xff] %v2927
        %2960 = vst [vmem:[%s338 + $0x78] sm:$0xff] %v2928
        %2961 = vst [vmem:[%s338 + $0x80] sm:$0xff] %v2929
        %2962 = vst [vmem:[%s338 + $0x88] sm:$0xff] %v2930
        %2963 = vst [vmem:[%s338 + $0x90] sm:$0xff] %v2931
        %2964 = vst [vmem:[%s338 + $0x98] sm:$0xff] %v2932
        %2965 = vst [vmem:[%s338 + $0xa0] sm:$0xff] %v2933
        %2966 = vst [vmem:[%s338 + $0xa8] sm:$0xff] %v2934
        %2967 = vst [vmem:[%s338 + $0xb0] sm:$0xff] %v2935
        %2968 = vst [vmem:[%s338 + $0xb8] sm:$0xff] %v2936
        %2969 = vst [vmem:[%s338 + $0xc0] sm:$0xff] %v2937
        %2970 = vst [vmem:[%s338 + $0xc8] sm:$0xff] %v2938
        %2971 = vst [vmem:[%s338 + $0xd0] sm:$0xff] %v2939
        %2972 = vst [vmem:[%s338 + $0xd8] sm:$0xff] %v2940
        %2973 = vst [vmem:[%s338 + $0xe0] sm:$0xff] %v2941
        %2974 = vst [vmem:[%s338 + $0xe8] sm:$0xff] %v2942
        %2975 = vst [vmem:[%s338 + $0xf0] sm:$0xff] %v2943
        %2976 = vst [vmem:[%s338 + $0xf8] sm:$0xff] %v2944
        %s2977 = sand.u32 %s207, 1
        %s2978 = scalar_lea.sflag [#allocation4], %s2977
        %s2979 = sand.u32 %s207, 1
        %s2980 = smul.addr %s2979, 256
        %s2981 = scalar_lea.vmem [#allocation7], %s2980
        // Predicated region
        $region61: #{tpu_custom_call.1} parent=51 // pred_check
          %p2982 = pneg %p217
        $region62: #{tpu_custom_call.1} parent=51 // pred_check_branch
          %2984 = sbr.rel (%p2982) target = $region64
        $region63: #{tpu_custom_call.1} parent=51 // pred_region
          %s2986 = ssub.s32 4096, 4096
          %2987 = vsyncadd %s2978, %s2986
          %s2988 = smul.addr %s26, 32
          %s2989 = smul.addr %s2988, 128
          %s2990 = scalar_lea.hbm %s8, %s2989
          %s2991 = sshll.u32 %s2981, 4
          %s2992 = int_to_ptr.vmem [resolvable:$true] %s2991
          %2997 = dma.vmem_to_hbm [thread:$0]  %s2992, 4096, %s2990, %s2978, 256, 256, 16
        $region64: #{tpu_custom_call.1} parent=51 // pred_fallthru
          _
      $region52: #{tpu_custom_call.1} parent=5 // pred_fallthru
        _
      %p2998 = scmp.le.s32.totalorder 2, %s21
      // Predicated region
      $region65: #{tpu_custom_call.1} parent=5 // pred_check
        %p2999 = pneg %p2998
      $region66: #{tpu_custom_call.1} parent=5 // pred_check_branch
        %3001 = sbr.rel (%p2999) target = $region68
      $region67: #{tpu_custom_call.1} parent=5 // pred_region
        %s3002 = ssub.s32 %s21, 2
        // Predicated region
        $region69: #{tpu_custom_call.1} parent=67 // pred_check
          %p3003 = pneg %p223
        $region70: #{tpu_custom_call.1} parent=67 // pred_check_branch
          %3005 = sbr.rel (%p3003) target = $region72
        $region71: #{tpu_custom_call.1} parent=67 // pred_region
          %s3006 = sand.u32 %s208, 1
          %s3007 = scalar_lea.sflag [#allocation4], %s3006
          %s3008 = sand.u32 %s208, 1
          %s3009 = smul.addr %s3008, 256
          %s3010 = scalar_lea.vmem [#allocation7], %s3009
          %3011 = dma.done %s3007, 4096
        $region72: #{tpu_custom_call.1} parent=67 // pred_fallthru
          _
      $region68: #{tpu_custom_call.1} parent=5 // pred_fallthru
        _
    $region6: #{tpu_custom_call.1} parent=1 // loop_footer
      %s25 = sadd.s32 1, %s21
    $region7: #{tpu_custom_call.1} parent=1 // loop_footer_branch
      %20 = sbr.rel target = $region3
    $region8: #{tpu_custom_call.1} parent=1 // loop_exit
      _
    %3012 = vsyncpa [#allocation3], 1
    %s3013 = scalar_lea.sflag [#allocation3], 1
    %3014 = vsyncpa %s3013, 1
    %3015 = vsyncpa [#allocation6], 1
    %3016 = vsyncpa [#allocation4], 1
    %s3017 = scalar_lea.sflag [#allocation4], 1
    %3018 = vsyncpa %s3017, 1

</llo_original>
